<compile_context>
chip_gen: v7x
topology: tpu7x:2x2x1
jax: 0.10.0
libtpu: 0.0.40
codegen_flags: <defaults>
</compile_context>

<pallas_src>
import math
import functools

import jax
import jax.numpy as jnp
from jax import lax
from jax.experimental import pallas as pl
from jax.experimental.pallas import tpu as pltpu

LN_EPS = 1e-5
INV_SQRT2 = 1.0 / math.sqrt(2.0)
SQRT_2_OVER_PI = math.sqrt(2.0 / math.pi)


def _mlp_kernel(x_ref,
                w1, b1, g1, be1,
                w2, b2, g2, be2,
                w3, b3, g3, be3,
                w4, b4, g4, be4,
                wf, bf,
                o_ref,
                *, approx_gelu, bf16_matmul):
    """Transposed layout: x_ref (6, TILE); weights (out, in); cols (out, 1)."""

    def mm(a, b):
        if bf16_matmul:
            a = a.astype(jnp.bfloat16)
            b = b.astype(jnp.bfloat16)
        return jnp.dot(a, b, preferred_element_type=jnp.float32)

    def gelu(h):
        if approx_gelu:
            # tanh form -> EUP (separate bundle slot from the VPU).
            return 0.5 * h * (1.0 + jnp.tanh(
                SQRT_2_OVER_PI * (h + 0.044715 * h * h * h)))
        # exact erf form (torch.nn.GELU() default)
        return 0.5 * h * (1.0 + lax.erf(h * INV_SQRT2))

    def block(h, w, b, g, be):
        # h: (K_in, TILE); w: (K_out, K_in)  ->  (K_out, TILE), lane-dense.
        h = mm(w[...], h) + b[...]
        # LayerNorm over the K_out rows (sublane axis): centered two-pass
        # stats via cheap sublane reductions (XLU), no extra MXU dots.
        mean = jnp.mean(h, axis=0, keepdims=True)          # (1, TILE)
        d = h - mean
        var = jnp.mean(d * d, axis=0, keepdims=True)       # biased var (torch LN)
        h = d * lax.rsqrt(var + LN_EPS) * g[...] + be[...]
        return gelu(h)

    h = x_ref[...]                                          # (6, TILE) fp32
    h = block(h, w1, b1, g1, be1)
    h = block(h, w2, b2, g2, be2)
    h = block(h, w3, b3, g3, be3)
    h = block(h, w4, b4, g4, be4)
    y_t = mm(wf[...], h) + bf[...]                          # (ST_pad, TILE)
    # Back to batch-major: XLU transpose (free slot); output stays lane-dense.
    o_ref[...] = y_t.T                                      # (TILE, ST_pad)


def init_params(key, K, space, time):
    """kaiming_normal_ (fan_in, gain=sqrt(2)) weights stored (out, in),
    bias = 0.01, LayerNorm gamma=1 / beta=0 (torch module never re-inits LN)."""
    ST = space * time
    dims = [("1", K, 6), ("2", K, K), ("3", K, K), ("4", K, K), ("f", ST, K)]
    keys = jax.random.split(key, len(dims))
    params = {}
    for (name, fan_out, fan_in), k in zip(dims, keys):
        std = math.sqrt(2.0 / fan_in)
        params[f"w{name}"] = (std * jax.random.normal(k, (fan_out, fan_in))
                              ).astype(jnp.float32)
        params[f"b{name}"] = jnp.full((fan_out,), 0.01, dtype=jnp.float32)
    for i in range(1, 5):
        params[f"g{i}"] = jnp.ones((K,), dtype=jnp.float32)
        params[f"be{i}"] = jnp.zeros((K,), dtype=jnp.float32)
    return params


def _round_up(a, m):
    return ((a + m - 1) // m) * m


@functools.partial(jax.jit,
                   static_argnames=("row_tile", "approx_gelu", "bf16_matmul"))
def ptc_map_pressure(x, params, *, row_tile=1024,
                     approx_gelu=False, bf16_matmul=False):
    B, in_dim = x.shape
    assert in_dim == 6
    K = params["w1"].shape[0]
    ST = params["wf"].shape[0]
    ST_pad = _round_up(ST, 128)          # keep output stores unmasked (dense vst)

    # ---- parameters: (out, in) weights; bias / gamma / beta as (out, 1) ----
    def col(v):
        return v.reshape(-1, 1)

    wf, bf = params["wf"], params["bf"]
    if ST_pad != ST:
        wf = jnp.pad(wf, ((0, ST_pad - ST), (0, 0)))
        bf = jnp.pad(bf, ((0, ST_pad - ST),))
    ordered = [
        params["w1"], col(params["b1"]), col(params["g1"]), col(params["be1"]),
        params["w2"], col(params["b2"]), col(params["g2"]), col(params["be2"]),
        params["w3"], col(params["b3"]), col(params["g3"]), col(params["be3"]),
        params["w4"], col(params["b4"]), col(params["g4"]), col(params["be4"]),
        wf, col(bf),
    ]
    param_bytes = 4 * sum(int(p.size) for p in ordered)

    # ---- batch tiling: batch sits on lanes -> tiles are multiples of 128 ----
    b128 = _round_up(B, 128)
    tile_cap = max(128, _round_up(row_tile, 128))
    # VMEM guard: double-buffered x/out blocks + resident params must fit
    # comfortably on every generation (v5e 16 MiB scoped default, v7x 64 MiB
    # physical).  Only binds when space*time becomes large.
    budget = 12 * 1024 * 1024
    per_col = 4 * 2 * (in_dim + ST_pad)           # fp32, double-buffered in+out
    vmem_cap = max(128, ((budget - param_bytes) // per_col) // 128 * 128)
    tile_cap = min(tile_cap, vmem_cap)
    if b128 <= 128:
        tile = 128                                 # single tiny step
    else:
        # >= 2 grid steps so both v7x TensorCores get work (no-op on v5e/v6e).
        tile = min(tile_cap, _round_up(-(-b128 // 2), 128))
    Bp = _round_up(b128, tile)

    xt = jnp.transpose(x)                          # (6, B): features on sublanes
    if Bp != B:
        xt = jnp.pad(xt, ((0, 0), (0, Bp - B)))    # padded columns are discarded

    def full_spec(arr):
        # Whole (tiny) parameter array resident in VMEM for every grid step.
        return pl.BlockSpec(arr.shape, lambda i: (0, 0))

    in_specs = [pl.BlockSpec((in_dim, tile), lambda i: (0, i))]
    in_specs += [full_spec(a) for a in ordered]

    kernel = functools.partial(_mlp_kernel,
                               approx_gelu=approx_gelu,
                               bf16_matmul=bf16_matmul)

    out = pl.pallas_call(
        kernel,
        out_shape=jax.ShapeDtypeStruct((Bp, ST_pad), jnp.float32),
        grid_spec=pltpu.PrefetchScalarGridSpec(
            num_scalar_prefetch=0,
            grid=(Bp // tile,),
            in_specs=in_specs,
            out_specs=pl.BlockSpec((tile, ST_pad), lambda i: (i, 0)),
        ),
        compiler_params=pltpu.CompilerParams(
            dimension_semantics=("parallel",),
            vmem_limit_bytes=int(min(
                max(param_bytes + per_col * tile + (2 << 20), 16 << 20),
                48 << 20)),
        ),
    )(xt, *ordered)

    if Bp != B or ST_pad != ST:
        # TODO(synk): for very large padded batches, return the padded slab and
        # let the caller ignore tail rows to avoid this extra HBM copy.
        out = out[:B, :ST]
    return out


def _reference(x, params):
    h = x
    for i in ("1", "2", "3", "4"):
        h = h @ params[f"w{i}"].T + params[f"b{i}"]
        mean = jnp.mean(h, axis=-1, keepdims=True)
        var = jnp.mean((h - mean) ** 2, axis=-1, keepdims=True)
        h = (h - mean) / jnp.sqrt(var + LN_EPS) * params[f"g{i}"] + params[f"be{i}"]
        h = 0.5 * h * (1.0 + lax.erf(h * INV_SQRT2))
    return h @ params["wf"].T + params["bf"]


if __name__ == "__main__":
    K, space, time = 32, 16, 8            # K=32, space*time = 128
    key = jax.random.PRNGKey(0)
    kx, kp, kx2 = jax.random.split(key, 3)
    params = init_params(kp, K, space, time)

    # Case 1: tiny batch -> single 128-wide lane tile.
    B = 16
    x = jax.random.normal(kx, (B, 6), dtype=jnp.float32)
    y = jax.block_until_ready(ptc_map_pressure(x, params))
    y_ref = _reference(x, params)
    assert y.shape == (B, space * time)
    assert jnp.allclose(y, y_ref, atol=1e-4, rtol=1e-4)

    # Case 2: ragged batch -> padded, multi-step "parallel" grid (3 x 128).
    B2 = 300
    x2 = jax.random.normal(kx2, (B2, 6), dtype=jnp.float32)
    y2 = jax.block_until_ready(ptc_map_pressure(x2, params, row_tile=128))
    y2_ref = _reference(x2, params)
    assert y2.shape == (B2, space * time)
    assert jnp.allclose(y2, y2_ref, atol=1e-4, rtol=1e-4)

    # Case 3: accuracy-gated fast path (tanh GELU on EUP + bf16 MXU inputs).
    y3 = jax.block_until_ready(
        ptc_map_pressure(x2, params, row_tile=128,
                         approx_gelu=True, bf16_matmul=True))
    assert y3.shape == (B2, space * time)
    assert bool(jnp.all(jnp.isfinite(y3)))
    assert float(jnp.max(jnp.abs(y3 - y2_ref))) < 0.15   # loose bf16/tanh gate

    print("KERNEL_OK")
</pallas_src>

<mosaic_0001>
module attributes {stable_mosaic.version = 11 : i64} {
  func.func @_mlp_kernel(%arg0: i32, %arg1: memref<6x128xf32, #tpu.memory_space<vmem>>, %arg2: memref<32x6xf32, #tpu.memory_space<vmem>>, %arg3: memref<32x1xf32, #tpu.memory_space<vmem>>, %arg4: memref<32x1xf32, #tpu.memory_space<vmem>>, %arg5: memref<32x1xf32, #tpu.memory_space<vmem>>, %arg6: memref<32x32xf32, #tpu.memory_space<vmem>>, %arg7: memref<32x1xf32, #tpu.memory_space<vmem>>, %arg8: memref<32x1xf32, #tpu.memory_space<vmem>>, %arg9: memref<32x1xf32, #tpu.memory_space<vmem>>, %arg10: memref<32x32xf32, #tpu.memory_space<vmem>>, %arg11: memref<32x1xf32, #tpu.memory_space<vmem>>, %arg12: memref<32x1xf32, #tpu.memory_space<vmem>>, %arg13: memref<32x1xf32, #tpu.memory_space<vmem>>, %arg14: memref<32x32xf32, #tpu.memory_space<vmem>>, %arg15: memref<32x1xf32, #tpu.memory_space<vmem>>, %arg16: memref<32x1xf32, #tpu.memory_space<vmem>>, %arg17: memref<32x1xf32, #tpu.memory_space<vmem>>, %arg18: memref<128x32xf32, #tpu.memory_space<vmem>>, %arg19: memref<128x1xf32, #tpu.memory_space<vmem>>, %arg20: memref<128x128xf32, #tpu.memory_space<vmem>>) attributes {dimension_semantics = [#tpu.dimension_semantics<parallel>], iteration_bounds = array<i64: 1>, scalar_prefetch = 0 : i64, scratch_operands = 0 : i64, tpu.core_type = #tpu.core_type<tc>, window_params = [{transform_indices = @transform_0, window_bounds = array<i64: 6, 128>}, {pipeline_mode = #tpu.pipeline_mode<synchronous>, transform_indices = @transform_1, window_bounds = array<i64: 32, 6>}, {pipeline_mode = #tpu.pipeline_mode<synchronous>, transform_indices = @transform_2, window_bounds = array<i64: 32, 1>}, {pipeline_mode = #tpu.pipeline_mode<synchronous>, transform_indices = @transform_3, window_bounds = array<i64: 32, 1>}, {pipeline_mode = #tpu.pipeline_mode<synchronous>, transform_indices = @transform_4, window_bounds = array<i64: 32, 1>}, {pipeline_mode = #tpu.pipeline_mode<synchronous>, transform_indices = @transform_5, window_bounds = array<i64: 32, 32>}, {pipeline_mode = #tpu.pipeline_mode<synchronous>, transform_indices = @transform_6, window_bounds = array<i64: 32, 1>}, {pipeline_mode = #tpu.pipeline_mode<synchronous>, transform_indices = @transform_7, window_bounds = array<i64: 32, 1>}, {pipeline_mode = #tpu.pipeline_mode<synchronous>, transform_indices = @transform_8, window_bounds = array<i64: 32, 1>}, {pipeline_mode = #tpu.pipeline_mode<synchronous>, transform_indices = @transform_9, window_bounds = array<i64: 32, 32>}, {pipeline_mode = #tpu.pipeline_mode<synchronous>, transform_indices = @transform_10, window_bounds = array<i64: 32, 1>}, {pipeline_mode = #tpu.pipeline_mode<synchronous>, transform_indices = @transform_11, window_bounds = array<i64: 32, 1>}, {pipeline_mode = #tpu.pipeline_mode<synchronous>, transform_indices = @transform_12, window_bounds = array<i64: 32, 1>}, {pipeline_mode = #tpu.pipeline_mode<synchronous>, transform_indices = @transform_13, window_bounds = array<i64: 32, 32>}, {pipeline_mode = #tpu.pipeline_mode<synchronous>, transform_indices = @transform_14, window_bounds = array<i64: 32, 1>}, {pipeline_mode = #tpu.pipeline_mode<synchronous>, transform_indices = @transform_15, window_bounds = array<i64: 32, 1>}, {pipeline_mode = #tpu.pipeline_mode<synchronous>, transform_indices = @transform_16, window_bounds = array<i64: 32, 1>}, {pipeline_mode = #tpu.pipeline_mode<synchronous>, transform_indices = @transform_17, window_bounds = array<i64: 128, 32>}, {pipeline_mode = #tpu.pipeline_mode<synchronous>, transform_indices = @transform_18, window_bounds = array<i64: 128, 1>}, {transform_indices = @transform_19, window_bounds = array<i64: 128, 128>}]} {
    %c0 = arith.constant 0 : index
    %c0_0 = arith.constant 0 : index
    %0 = vector.load %arg1[%c0, %c0_0] : memref<6x128xf32, #tpu.memory_space<vmem>>, vector<6x128xf32>
    %c0_1 = arith.constant 0 : index
    %c0_2 = arith.constant 0 : index
    %1 = vector.load %arg2[%c0_1, %c0_2] : memref<32x6xf32, #tpu.memory_space<vmem>>, vector<32x6xf32>
    %cst = arith.constant dense<0.000000e+00> : vector<32x128xf32>
    %2 = tpu.matmul %1, %0, %cst {dimension_numbers = #tpu.dot_dimension_numbers<[1], [0], [0], [1], [0, 0, 1, 1], [], []>} : vector<32x6xf32>, vector<6x128xf32>, vector<32x128xf32> -> vector<32x128xf32>
    %c0_3 = arith.constant 0 : index
    %c0_4 = arith.constant 0 : index
    %3 = vector.load %arg3[%c0_3, %c0_4] : memref<32x1xf32, #tpu.memory_space<vmem>>, vector<32x1xf32>
    %4 = vector.broadcast %3 : vector<32x1xf32> to vector<32x128xf32>
    %5 = arith.addf %2, %4 : vector<32x128xf32>
    %cst_5 = arith.constant dense<0.000000e+00> : vector<128xf32>
    %6 = vector.multi_reduction <add>, %5, %cst_5 [0] : vector<32x128xf32> to vector<128xf32>
    %7 = vector.shape_cast %6 : vector<128xf32> to vector<1x128xf32>
    %cst_6 = arith.constant 3.200000e+01 : f32
    %8 = vector.broadcast %cst_6 : f32 to vector<1x128xf32>
    %9 = arith.divf %7, %8 : vector<1x128xf32>
    %10 = vector.broadcast %9 : vector<1x128xf32> to vector<32x128xf32>
    %11 = arith.subf %5, %10 : vector<32x128xf32>
    %12 = arith.mulf %11, %11 : vector<32x128xf32>
    %cst_7 = arith.constant dense<0.000000e+00> : vector<128xf32>
    %13 = vector.multi_reduction <add>, %12, %cst_7 [0] : vector<32x128xf32> to vector<128xf32>
    %14 = vector.shape_cast %13 : vector<128xf32> to vector<1x128xf32>
    %cst_8 = arith.constant 3.200000e+01 : f32
    %15 = vector.broadcast %cst_8 : f32 to vector<1x128xf32>
    %16 = arith.divf %14, %15 : vector<1x128xf32>
    %cst_9 = arith.constant 9.99999974E-6 : f32
    %17 = vector.broadcast %cst_9 : f32 to vector<1x128xf32>
    %18 = arith.addf %16, %17 : vector<1x128xf32>
    %19 = math.rsqrt %18 : vector<1x128xf32>
    %20 = vector.broadcast %19 : vector<1x128xf32> to vector<32x128xf32>
    %21 = arith.mulf %11, %20 : vector<32x128xf32>
    %c0_10 = arith.constant 0 : index
    %c0_11 = arith.constant 0 : index
    %22 = vector.load %arg4[%c0_10, %c0_11] : memref<32x1xf32, #tpu.memory_space<vmem>>, vector<32x1xf32>
    %23 = vector.broadcast %22 : vector<32x1xf32> to vector<32x128xf32>
    %24 = arith.mulf %21, %23 : vector<32x128xf32>
    %c0_12 = arith.constant 0 : index
    %c0_13 = arith.constant 0 : index
    %25 = vector.load %arg5[%c0_12, %c0_13] : memref<32x1xf32, #tpu.memory_space<vmem>>, vector<32x1xf32>
    %26 = vector.broadcast %25 : vector<32x1xf32> to vector<32x128xf32>
    %27 = arith.addf %24, %26 : vector<32x128xf32>
    %cst_14 = arith.constant 5.000000e-01 : f32
    %28 = vector.broadcast %cst_14 : f32 to vector<32x128xf32>
    %29 = arith.mulf %28, %27 : vector<32x128xf32>
    %cst_15 = arith.constant 0.707106769 : f32
    %30 = vector.broadcast %cst_15 : f32 to vector<32x128xf32>
    %31 = arith.mulf %27, %30 : vector<32x128xf32>
    %32 = math.erf %31 : vector<32x128xf32>
    %cst_16 = arith.constant 1.000000e+00 : f32
    %33 = vector.broadcast %cst_16 : f32 to vector<32x128xf32>
    %34 = arith.addf %33, %32 : vector<32x128xf32>
    %35 = arith.mulf %29, %34 : vector<32x128xf32>
    %c0_17 = arith.constant 0 : index
    %c0_18 = arith.constant 0 : index
    %36 = vector.load %arg6[%c0_17, %c0_18] : memref<32x32xf32, #tpu.memory_space<vmem>>, vector<32x32xf32>
    %cst_19 = arith.constant dense<0.000000e+00> : vector<32x128xf32>
    %37 = tpu.matmul %36, %35, %cst_19 {dimension_numbers = #tpu.dot_dimension_numbers<[1], [0], [0], [1], [0, 0, 1, 1], [], []>} : vector<32x32xf32>, vector<32x128xf32>, vector<32x128xf32> -> vector<32x128xf32>
    %c0_20 = arith.constant 0 : index
    %c0_21 = arith.constant 0 : index
    %38 = vector.load %arg7[%c0_20, %c0_21] : memref<32x1xf32, #tpu.memory_space<vmem>>, vector<32x1xf32>
    %39 = vector.broadcast %38 : vector<32x1xf32> to vector<32x128xf32>
    %40 = arith.addf %37, %39 : vector<32x128xf32>
    %cst_22 = arith.constant dense<0.000000e+00> : vector<128xf32>
    %41 = vector.multi_reduction <add>, %40, %cst_22 [0] : vector<32x128xf32> to vector<128xf32>
    %42 = vector.shape_cast %41 : vector<128xf32> to vector<1x128xf32>
    %cst_23 = arith.constant 3.200000e+01 : f32
    %43 = vector.broadcast %cst_23 : f32 to vector<1x128xf32>
    %44 = arith.divf %42, %43 : vector<1x128xf32>
    %45 = vector.broadcast %44 : vector<1x128xf32> to vector<32x128xf32>
    %46 = arith.subf %40, %45 : vector<32x128xf32>
    %47 = arith.mulf %46, %46 : vector<32x128xf32>
    %cst_24 = arith.constant dense<0.000000e+00> : vector<128xf32>
    %48 = vector.multi_reduction <add>, %47, %cst_24 [0] : vector<32x128xf32> to vector<128xf32>
    %49 = vector.shape_cast %48 : vector<128xf32> to vector<1x128xf32>
    %cst_25 = arith.constant 3.200000e+01 : f32
    %50 = vector.broadcast %cst_25 : f32 to vector<1x128xf32>
    %51 = arith.divf %49, %50 : vector<1x128xf32>
    %cst_26 = arith.constant 9.99999974E-6 : f32
    %52 = vector.broadcast %cst_26 : f32 to vector<1x128xf32>
    %53 = arith.addf %51, %52 : vector<1x128xf32>
    %54 = math.rsqrt %53 : vector<1x128xf32>
    %55 = vector.broadcast %54 : vector<1x128xf32> to vector<32x128xf32>
    %56 = arith.mulf %46, %55 : vector<32x128xf32>
    %c0_27 = arith.constant 0 : index
    %c0_28 = arith.constant 0 : index
    %57 = vector.load %arg8[%c0_27, %c0_28] : memref<32x1xf32, #tpu.memory_space<vmem>>, vector<32x1xf32>
    %58 = vector.broadcast %57 : vector<32x1xf32> to vector<32x128xf32>
    %59 = arith.mulf %56, %58 : vector<32x128xf32>
    %c0_29 = arith.constant 0 : index
    %c0_30 = arith.constant 0 : index
    %60 = vector.load %arg9[%c0_29, %c0_30] : memref<32x1xf32, #tpu.memory_space<vmem>>, vector<32x1xf32>
    %61 = vector.broadcast %60 : vector<32x1xf32> to vector<32x128xf32>
    %62 = arith.addf %59, %61 : vector<32x128xf32>
    %cst_31 = arith.constant 5.000000e-01 : f32
    %63 = vector.broadcast %cst_31 : f32 to vector<32x128xf32>
    %64 = arith.mulf %63, %62 : vector<32x128xf32>
    %cst_32 = arith.constant 0.707106769 : f32
    %65 = vector.broadcast %cst_32 : f32 to vector<32x128xf32>
    %66 = arith.mulf %62, %65 : vector<32x128xf32>
    %67 = math.erf %66 : vector<32x128xf32>
    %cst_33 = arith.constant 1.000000e+00 : f32
    %68 = vector.broadcast %cst_33 : f32 to vector<32x128xf32>
    %69 = arith.addf %68, %67 : vector<32x128xf32>
    %70 = arith.mulf %64, %69 : vector<32x128xf32>
    %c0_34 = arith.constant 0 : index
    %c0_35 = arith.constant 0 : index
    %71 = vector.load %arg10[%c0_34, %c0_35] : memref<32x32xf32, #tpu.memory_space<vmem>>, vector<32x32xf32>
    %cst_36 = arith.constant dense<0.000000e+00> : vector<32x128xf32>
    %72 = tpu.matmul %71, %70, %cst_36 {dimension_numbers = #tpu.dot_dimension_numbers<[1], [0], [0], [1], [0, 0, 1, 1], [], []>} : vector<32x32xf32>, vector<32x128xf32>, vector<32x128xf32> -> vector<32x128xf32>
    %c0_37 = arith.constant 0 : index
    %c0_38 = arith.constant 0 : index
    %73 = vector.load %arg11[%c0_37, %c0_38] : memref<32x1xf32, #tpu.memory_space<vmem>>, vector<32x1xf32>
    %74 = vector.broadcast %73 : vector<32x1xf32> to vector<32x128xf32>
    %75 = arith.addf %72, %74 : vector<32x128xf32>
    %cst_39 = arith.constant dense<0.000000e+00> : vector<128xf32>
    %76 = vector.multi_reduction <add>, %75, %cst_39 [0] : vector<32x128xf32> to vector<128xf32>
    %77 = vector.shape_cast %76 : vector<128xf32> to vector<1x128xf32>
    %cst_40 = arith.constant 3.200000e+01 : f32
    %78 = vector.broadcast %cst_40 : f32 to vector<1x128xf32>
    %79 = arith.divf %77, %78 : vector<1x128xf32>
    %80 = vector.broadcast %79 : vector<1x128xf32> to vector<32x128xf32>
    %81 = arith.subf %75, %80 : vector<32x128xf32>
    %82 = arith.mulf %81, %81 : vector<32x128xf32>
    %cst_41 = arith.constant dense<0.000000e+00> : vector<128xf32>
    %83 = vector.multi_reduction <add>, %82, %cst_41 [0] : vector<32x128xf32> to vector<128xf32>
    %84 = vector.shape_cast %83 : vector<128xf32> to vector<1x128xf32>
    %cst_42 = arith.constant 3.200000e+01 : f32
    %85 = vector.broadcast %cst_42 : f32 to vector<1x128xf32>
    %86 = arith.divf %84, %85 : vector<1x128xf32>
    %cst_43 = arith.constant 9.99999974E-6 : f32
    %87 = vector.broadcast %cst_43 : f32 to vector<1x128xf32>
    %88 = arith.addf %86, %87 : vector<1x128xf32>
    %89 = math.rsqrt %88 : vector<1x128xf32>
    %90 = vector.broadcast %89 : vector<1x128xf32> to vector<32x128xf32>
    %91 = arith.mulf %81, %90 : vector<32x128xf32>
    %c0_44 = arith.constant 0 : index
    %c0_45 = arith.constant 0 : index
    %92 = vector.load %arg12[%c0_44, %c0_45] : memref<32x1xf32, #tpu.memory_space<vmem>>, vector<32x1xf32>
    %93 = vector.broadcast %92 : vector<32x1xf32> to vector<32x128xf32>
    %94 = arith.mulf %91, %93 : vector<32x128xf32>
    %c0_46 = arith.constant 0 : index
    %c0_47 = arith.constant 0 : index
    %95 = vector.load %arg13[%c0_46, %c0_47] : memref<32x1xf32, #tpu.memory_space<vmem>>, vector<32x1xf32>
    %96 = vector.broadcast %95 : vector<32x1xf32> to vector<32x128xf32>
    %97 = arith.addf %94, %96 : vector<32x128xf32>
    %cst_48 = arith.constant 5.000000e-01 : f32
    %98 = vector.broadcast %cst_48 : f32 to vector<32x128xf32>
    %99 = arith.mulf %98, %97 : vector<32x128xf32>
    %cst_49 = arith.constant 0.707106769 : f32
    %100 = vector.broadcast %cst_49 : f32 to vector<32x128xf32>
    %101 = arith.mulf %97, %100 : vector<32x128xf32>
    %102 = math.erf %101 : vector<32x128xf32>
    %cst_50 = arith.constant 1.000000e+00 : f32
    %103 = vector.broadcast %cst_50 : f32 to vector<32x128xf32>
    %104 = arith.addf %103, %102 : vector<32x128xf32>
    %105 = arith.mulf %99, %104 : vector<32x128xf32>
    %c0_51 = arith.constant 0 : index
    %c0_52 = arith.constant 0 : index
    %106 = vector.load %arg14[%c0_51, %c0_52] : memref<32x32xf32, #tpu.memory_space<vmem>>, vector<32x32xf32>
    %cst_53 = arith.constant dense<0.000000e+00> : vector<32x128xf32>
    %107 = tpu.matmul %106, %105, %cst_53 {dimension_numbers = #tpu.dot_dimension_numbers<[1], [0], [0], [1], [0, 0, 1, 1], [], []>} : vector<32x32xf32>, vector<32x128xf32>, vector<32x128xf32> -> vector<32x128xf32>
    %c0_54 = arith.constant 0 : index
    %c0_55 = arith.constant 0 : index
    %108 = vector.load %arg15[%c0_54, %c0_55] : memref<32x1xf32, #tpu.memory_space<vmem>>, vector<32x1xf32>
    %109 = vector.broadcast %108 : vector<32x1xf32> to vector<32x128xf32>
    %110 = arith.addf %107, %109 : vector<32x128xf32>
    %cst_56 = arith.constant dense<0.000000e+00> : vector<128xf32>
    %111 = vector.multi_reduction <add>, %110, %cst_56 [0] : vector<32x128xf32> to vector<128xf32>
    %112 = vector.shape_cast %111 : vector<128xf32> to vector<1x128xf32>
    %cst_57 = arith.constant 3.200000e+01 : f32
    %113 = vector.broadcast %cst_57 : f32 to vector<1x128xf32>
    %114 = arith.divf %112, %113 : vector<1x128xf32>
    %115 = vector.broadcast %114 : vector<1x128xf32> to vector<32x128xf32>
    %116 = arith.subf %110, %115 : vector<32x128xf32>
    %117 = arith.mulf %116, %116 : vector<32x128xf32>
    %cst_58 = arith.constant dense<0.000000e+00> : vector<128xf32>
    %118 = vector.multi_reduction <add>, %117, %cst_58 [0] : vector<32x128xf32> to vector<128xf32>
    %119 = vector.shape_cast %118 : vector<128xf32> to vector<1x128xf32>
    %cst_59 = arith.constant 3.200000e+01 : f32
    %120 = vector.broadcast %cst_59 : f32 to vector<1x128xf32>
    %121 = arith.divf %119, %120 : vector<1x128xf32>
    %cst_60 = arith.constant 9.99999974E-6 : f32
    %122 = vector.broadcast %cst_60 : f32 to vector<1x128xf32>
    %123 = arith.addf %121, %122 : vector<1x128xf32>
    %124 = math.rsqrt %123 : vector<1x128xf32>
    %125 = vector.broadcast %124 : vector<1x128xf32> to vector<32x128xf32>
    %126 = arith.mulf %116, %125 : vector<32x128xf32>
    %c0_61 = arith.constant 0 : index
    %c0_62 = arith.constant 0 : index
    %127 = vector.load %arg16[%c0_61, %c0_62] : memref<32x1xf32, #tpu.memory_space<vmem>>, vector<32x1xf32>
    %128 = vector.broadcast %127 : vector<32x1xf32> to vector<32x128xf32>
    %129 = arith.mulf %126, %128 : vector<32x128xf32>
    %c0_63 = arith.constant 0 : index
    %c0_64 = arith.constant 0 : index
    %130 = vector.load %arg17[%c0_63, %c0_64] : memref<32x1xf32, #tpu.memory_space<vmem>>, vector<32x1xf32>
    %131 = vector.broadcast %130 : vector<32x1xf32> to vector<32x128xf32>
    %132 = arith.addf %129, %131 : vector<32x128xf32>
    %cst_65 = arith.constant 5.000000e-01 : f32
    %133 = vector.broadcast %cst_65 : f32 to vector<32x128xf32>
    %134 = arith.mulf %133, %132 : vector<32x128xf32>
    %cst_66 = arith.constant 0.707106769 : f32
    %135 = vector.broadcast %cst_66 : f32 to vector<32x128xf32>
    %136 = arith.mulf %132, %135 : vector<32x128xf32>
    %137 = math.erf %136 : vector<32x128xf32>
    %cst_67 = arith.constant 1.000000e+00 : f32
    %138 = vector.broadcast %cst_67 : f32 to vector<32x128xf32>
    %139 = arith.addf %138, %137 : vector<32x128xf32>
    %140 = arith.mulf %134, %139 : vector<32x128xf32>
    %c0_68 = arith.constant 0 : index
    %c0_69 = arith.constant 0 : index
    %141 = vector.load %arg18[%c0_68, %c0_69] : memref<128x32xf32, #tpu.memory_space<vmem>>, vector<128x32xf32>
    %cst_70 = arith.constant dense<0.000000e+00> : vector<128x128xf32>
    %142 = tpu.matmul %141, %140, %cst_70 {dimension_numbers = #tpu.dot_dimension_numbers<[1], [0], [0], [1], [0, 0, 1, 1], [], []>} : vector<128x32xf32>, vector<32x128xf32>, vector<128x128xf32> -> vector<128x128xf32>
    %c0_71 = arith.constant 0 : index
    %c0_72 = arith.constant 0 : index
    %143 = vector.load %arg19[%c0_71, %c0_72] : memref<128x1xf32, #tpu.memory_space<vmem>>, vector<128x1xf32>
    %144 = vector.broadcast %143 : vector<128x1xf32> to vector<128x128xf32>
    %145 = arith.addf %142, %144 : vector<128x128xf32>
    %146 = tpu.transpose %145, [1, 0] : vector<128x128xf32> -> vector<128x128xf32>
    %c0_73 = arith.constant 0 : index
    %c0_74 = arith.constant 0 : index
    %147 = vector.load %arg20[%c0_73, %c0_74] : memref<128x128xf32, #tpu.memory_space<vmem>>, vector<128x128xf32>
    tpu.vector_store %arg20[%c0_73, %c0_74], %146 {strides = array<i32>} : memref<128x128xf32, #tpu.memory_space<vmem>>, vector<128x128xf32>,
    return
  }
  func.func @transform_0(%arg0: i32) -> (i32, i32) {
    %c0_i32 = arith.constant 0 : i32
    %c0_i32_0 = arith.constant 0 : i32
    return %c0_i32, %arg0 : i32, i32
  }
  func.func @transform_1(%arg0: i32) -> (i32, i32) {
    %c0_i32 = arith.constant 0 : i32
    %c0_i32_0 = arith.constant 0 : i32
    %c0_i32_1 = arith.constant 0 : i32
    return %c0_i32, %c0_i32_0 : i32, i32
  }
  func.func @transform_2(%arg0: i32) -> (i32, i32) {
    %c0_i32 = arith.constant 0 : i32
    %c0_i32_0 = arith.constant 0 : i32
    %c0_i32_1 = arith.constant 0 : i32
    return %c0_i32, %c0_i32_0 : i32, i32
  }
  func.func @transform_3(%arg0: i32) -> (i32, i32) {
    %c0_i32 = arith.constant 0 : i32
    %c0_i32_0 = arith.constant 0 : i32
    %c0_i32_1 = arith.constant 0 : i32
    return %c0_i32, %c0_i32_0 : i32, i32
  }
  func.func @transform_4(%arg0: i32) -> (i32, i32) {
    %c0_i32 = arith.constant 0 : i32
    %c0_i32_0 = arith.constant 0 : i32
    %c0_i32_1 = arith.constant 0 : i32
    return %c0_i32, %c0_i32_0 : i32, i32
  }
  func.func @transform_5(%arg0: i32) -> (i32, i32) {
    %c0_i32 = arith.constant 0 : i32
    %c0_i32_0 = arith.constant 0 : i32
    %c0_i32_1 = arith.constant 0 : i32
    return %c0_i32, %c0_i32_0 : i32, i32
  }
  func.func @transform_6(%arg0: i32) -> (i32, i32) {
    %c0_i32 = arith.constant 0 : i32
    %c0_i32_0 = arith.constant 0 : i32
    %c0_i32_1 = arith.constant 0 : i32
    return %c0_i32, %c0_i32_0 : i32, i32
  }
  func.func @transform_7(%arg0: i32) -> (i32, i32) {
    %c0_i32 = arith.constant 0 : i32
    %c0_i32_0 = arith.constant 0 : i32
    %c0_i32_1 = arith.constant 0 : i32
    return %c0_i32, %c0_i32_0 : i32, i32
  }
  func.func @transform_8(%arg0: i32) -> (i32, i32) {
    %c0_i32 = arith.constant 0 : i32
    %c0_i32_0 = arith.constant 0 : i32
    %c0_i32_1 = arith.constant 0 : i32
    return %c0_i32, %c0_i32_0 : i32, i32
  }
  func.func @transform_9(%arg0: i32) -> (i32, i32) {
    %c0_i32 = arith.constant 0 : i32
    %c0_i32_0 = arith.constant 0 : i32
    %c0_i32_1 = arith.constant 0 : i32
    return %c0_i32, %c0_i32_0 : i32, i32
  }
  func.func @transform_10(%arg0: i32) -> (i32, i32) {
    %c0_i32 = arith.constant 0 : i32
    %c0_i32_0 = arith.constant 0 : i32
    %c0_i32_1 = arith.constant 0 : i32
    return %c0_i32, %c0_i32_0 : i32, i32
  }
  func.func @transform_11(%arg0: i32) -> (i32, i32) {
    %c0_i32 = arith.constant 0 : i32
    %c0_i32_0 = arith.constant 0 : i32
    %c0_i32_1 = arith.constant 0 : i32
    return %c0_i32, %c0_i32_0 : i32, i32
  }
  func.func @transform_12(%arg0: i32) -> (i32, i32) {
    %c0_i32 = arith.constant 0 : i32
    %c0_i32_0 = arith.constant 0 : i32
    %c0_i32_1 = arith.constant 0 : i32
    return %c0_i32, %c0_i32_0 : i32, i32
  }
  func.func @transform_13(%arg0: i32) -> (i32, i32) {
    %c0_i32 = arith.constant 0 : i32
    %c0_i32_0 = arith.constant 0 : i32
    %c0_i32_1 = arith.constant 0 : i32
    return %c0_i32, %c0_i32_0 : i32, i32
  }
  func.func @transform_14(%arg0: i32) -> (i32, i32) {
    %c0_i32 = arith.constant 0 : i32
    %c0_i32_0 = arith.constant 0 : i32
    %c0_i32_1 = arith.constant 0 : i32
    return %c0_i32, %c0_i32_0 : i32, i32
  }
  func.func @transform_15(%arg0: i32) -> (i32, i32) {
    %c0_i32 = arith.constant 0 : i32
    %c0_i32_0 = arith.constant 0 : i32
    %c0_i32_1 = arith.constant 0 : i32
    return %c0_i32, %c0_i32_0 : i32, i32
  }
  func.func @transform_16(%arg0: i32) -> (i32, i32) {
    %c0_i32 = arith.constant 0 : i32
    %c0_i32_0 = arith.constant 0 : i32
    %c0_i32_1 = arith.constant 0 : i32
    return %c0_i32, %c0_i32_0 : i32, i32
  }
  func.func @transform_17(%arg0: i32) -> (i32, i32) {
    %c0_i32 = arith.constant 0 : i32
    %c0_i32_0 = arith.constant 0 : i32
    %c0_i32_1 = arith.constant 0 : i32
    return %c0_i32, %c0_i32_0 : i32, i32
  }
  func.func @transform_18(%arg0: i32) -> (i32, i32) {
    %c0_i32 = arith.constant 0 : i32
    %c0_i32_0 = arith.constant 0 : i32
    %c0_i32_1 = arith.constant 0 : i32
    return %c0_i32, %c0_i32_0 : i32, i32
  }
  func.func @transform_19(%arg0: i32) -> (i32, i32) {
    %c0_i32 = arith.constant 0 : i32
    %c0_i32_0 = arith.constant 0 : i32
    return %arg0, %c0_i32 : i32, i32
  }
}

</mosaic_0001>

<llo_original>
// kernel: ptc_map_pressure.1
$region0: #{ptc_map_pressure.1}
  #allocation0 [shape = 'u32[]', space=smem, size = 0x4, offset = 0x4, fixed_abs, tag = 'smem constant byte address 0x4 - core index']
  #allocation1 [shape = 'u32[144,128]{1,0:T(1,128)}', space=vmem, size = 0x12000, scoped, tag = 'internal scratch']
  %s0 = inlined_call_operand.vmem [shape: f32[6,128], index: 0, kind: input, shape index: {}]
  %s1 = inlined_call_operand.vmem [shape: f32[32,6], index: 1, kind: input, shape index: {}]
  %s2 = inlined_call_operand.vmem [shape: f32[32,1], index: 2, kind: input, shape index: {}]
  %s3 = inlined_call_operand.vmem [shape: f32[32,1], index: 3, kind: input, shape index: {}]
  %s4 = inlined_call_operand.vmem [shape: f32[32,1], index: 4, kind: input, shape index: {}]
  %s5 = inlined_call_operand.vmem [shape: f32[32,32], index: 5, kind: input, shape index: {}]
  %s6 = inlined_call_operand.vmem [shape: f32[32,1], index: 6, kind: input, shape index: {}]
  %s7 = inlined_call_operand.vmem [shape: f32[32,1], index: 7, kind: input, shape index: {}]
  %s8 = inlined_call_operand.vmem [shape: f32[32,1], index: 8, kind: input, shape index: {}]
  %s9 = inlined_call_operand.vmem [shape: f32[32,32], index: 9, kind: input, shape index: {}]
  %s10 = inlined_call_operand.vmem [shape: f32[32,1], index: 10, kind: input, shape index: {}]
  %s11 = inlined_call_operand.vmem [shape: f32[32,1], index: 11, kind: input, shape index: {}]
  %s12 = inlined_call_operand.vmem [shape: f32[32,1], index: 12, kind: input, shape index: {}]
  %s13 = inlined_call_operand.vmem [shape: f32[32,32], index: 13, kind: input, shape index: {}]
  %s14 = inlined_call_operand.vmem [shape: f32[32,1], index: 14, kind: input, shape index: {}]
  %s15 = inlined_call_operand.vmem [shape: f32[32,1], index: 15, kind: input, shape index: {}]
  %s16 = inlined_call_operand.vmem [shape: f32[32,1], index: 16, kind: input, shape index: {}]
  %s17 = inlined_call_operand.vmem [shape: f32[128,32], index: 17, kind: input, shape index: {}]
  %s18 = inlined_call_operand.vmem [shape: f32[128,1], index: 18, kind: input, shape index: {}]
  %s19 = inlined_call_operand.vmem [shape: f32[128,128], index: 19, kind: output, shape index: {}]
  %s20 = sld [smem:[#allocation0]]
  $region86: #{ptc_map_pressure.1} parent=0
    _
  %s22 = ssub.s32 1, %s20
  %s23 = scalar_select 0, %s22, %s20
  // Predicated region
  $region2: #{ptc_map_pressure.1} parent=0 // pred_check
    _
  $region3: #{ptc_map_pressure.1} parent=0 // pred_check_branch
    %25 = sbr.rel (0) target = $region5
  $region4: #{ptc_map_pressure.1} parent=0 // pred_region
    _
  $region5: #{ptc_map_pressure.1} parent=0 // pred_fallthru
    _
  // Predicated region
  $region6: #{ptc_map_pressure.1} parent=0 // pred_check
    _
  $region7: #{ptc_map_pressure.1} parent=0 // pred_check_branch
    %27 = sbr.rel (0) target = $region9
  $region8: #{ptc_map_pressure.1} parent=0 // pred_region
    _
  $region9: #{ptc_map_pressure.1} parent=0 // pred_fallthru
    _
  // Predicated region
  $region10: #{ptc_map_pressure.1} parent=0 // pred_check
    _
  $region11: #{ptc_map_pressure.1} parent=0 // pred_check_branch
    %29 = sbr.rel (0) target = $region13
  $region12: #{ptc_map_pressure.1} parent=0 // pred_region
    _
  $region13: #{ptc_map_pressure.1} parent=0 // pred_fallthru
    _
  // Predicated region
  $region14: #{ptc_map_pressure.1} parent=0 // pred_check
    _
  $region15: #{ptc_map_pressure.1} parent=0 // pred_check_branch
    %31 = sbr.rel (0) target = $region17
  $region16: #{ptc_map_pressure.1} parent=0 // pred_region
    _
  $region17: #{ptc_map_pressure.1} parent=0 // pred_fallthru
    _
  // Predicated region
  $region18: #{ptc_map_pressure.1} parent=0 // pred_check
    _
  $region19: #{ptc_map_pressure.1} parent=0 // pred_check_branch
    %33 = sbr.rel (0) target = $region21
  $region20: #{ptc_map_pressure.1} parent=0 // pred_region
    _
  $region21: #{ptc_map_pressure.1} parent=0 // pred_fallthru
    _
  // Predicated region
  $region22: #{ptc_map_pressure.1} parent=0 // pred_check
    _
  $region23: #{ptc_map_pressure.1} parent=0 // pred_check_branch
    %35 = sbr.rel (0) target = $region25
  $region24: #{ptc_map_pressure.1} parent=0 // pred_region
    _
  $region25: #{ptc_map_pressure.1} parent=0 // pred_fallthru
    _
  // Predicated region
  $region26: #{ptc_map_pressure.1} parent=0 // pred_check
    _
  $region27: #{ptc_map_pressure.1} parent=0 // pred_check_branch
    %37 = sbr.rel (0) target = $region29
  $region28: #{ptc_map_pressure.1} parent=0 // pred_region
    _
  $region29: #{ptc_map_pressure.1} parent=0 // pred_fallthru
    _
  // Predicated region
  $region30: #{ptc_map_pressure.1} parent=0 // pred_check
    _
  $region31: #{ptc_map_pressure.1} parent=0 // pred_check_branch
    %39 = sbr.rel (0) target = $region33
  $region32: #{ptc_map_pressure.1} parent=0 // pred_region
    _
  $region33: #{ptc_map_pressure.1} parent=0 // pred_fallthru
    _
  // Predicated region
  $region34: #{ptc_map_pressure.1} parent=0 // pred_check
    _
  $region35: #{ptc_map_pressure.1} parent=0 // pred_check_branch
    %41 = sbr.rel (0) target = $region37
  $region36: #{ptc_map_pressure.1} parent=0 // pred_region
    _
  $region37: #{ptc_map_pressure.1} parent=0 // pred_fallthru
    _
  // Predicated region
  $region38: #{ptc_map_pressure.1} parent=0 // pred_check
    _
  $region39: #{ptc_map_pressure.1} parent=0 // pred_check_branch
    %43 = sbr.rel (0) target = $region41
  $region40: #{ptc_map_pressure.1} parent=0 // pred_region
    _
  $region41: #{ptc_map_pressure.1} parent=0 // pred_fallthru
    _
  // Predicated region
  $region42: #{ptc_map_pressure.1} parent=0 // pred_check
    _
  $region43: #{ptc_map_pressure.1} parent=0 // pred_check_branch
    %45 = sbr.rel (0) target = $region45
  $region44: #{ptc_map_pressure.1} parent=0 // pred_region
    _
  $region45: #{ptc_map_pressure.1} parent=0 // pred_fallthru
    _
  // Predicated region
  $region46: #{ptc_map_pressure.1} parent=0 // pred_check
    _
  $region47: #{ptc_map_pressure.1} parent=0 // pred_check_branch
    %47 = sbr.rel (0) target = $region49
  $region48: #{ptc_map_pressure.1} parent=0 // pred_region
    _
  $region49: #{ptc_map_pressure.1} parent=0 // pred_fallthru
    _
  // Predicated region
  $region50: #{ptc_map_pressure.1} parent=0 // pred_check
    _
  $region51: #{ptc_map_pressure.1} parent=0 // pred_check_branch
    %49 = sbr.rel (0) target = $region53
  $region52: #{ptc_map_pressure.1} parent=0 // pred_region
    _
  $region53: #{ptc_map_pressure.1} parent=0 // pred_fallthru
    _
  // Predicated region
  $region54: #{ptc_map_pressure.1} parent=0 // pred_check
    _
  $region55: #{ptc_map_pressure.1} parent=0 // pred_check_branch
    %51 = sbr.rel (0) target = $region57
  $region56: #{ptc_map_pressure.1} parent=0 // pred_region
    _
  $region57: #{ptc_map_pressure.1} parent=0 // pred_fallthru
    _
  // Predicated region
  $region58: #{ptc_map_pressure.1} parent=0 // pred_check
    _
  $region59: #{ptc_map_pressure.1} parent=0 // pred_check_branch
    %53 = sbr.rel (0) target = $region61
  $region60: #{ptc_map_pressure.1} parent=0 // pred_region
    _
  $region61: #{ptc_map_pressure.1} parent=0 // pred_fallthru
    _
  // Predicated region
  $region62: #{ptc_map_pressure.1} parent=0 // pred_check
    _
  $region63: #{ptc_map_pressure.1} parent=0 // pred_check_branch
    %55 = sbr.rel (0) target = $region65
  $region64: #{ptc_map_pressure.1} parent=0 // pred_region
    _
  $region65: #{ptc_map_pressure.1} parent=0 // pred_fallthru
    _
  // Predicated region
  $region66: #{ptc_map_pressure.1} parent=0 // pred_check
    _
  $region67: #{ptc_map_pressure.1} parent=0 // pred_check_branch
    %57 = sbr.rel (0) target = $region69
  $region68: #{ptc_map_pressure.1} parent=0 // pred_region
    _
  $region69: #{ptc_map_pressure.1} parent=0 // pred_fallthru
    _
  // Predicated region
  $region70: #{ptc_map_pressure.1} parent=0 // pred_check
    _
  $region71: #{ptc_map_pressure.1} parent=0 // pred_check_branch
    %59 = sbr.rel (0) target = $region73
  $region72: #{ptc_map_pressure.1} parent=0 // pred_region
    _
  $region73: #{ptc_map_pressure.1} parent=0 // pred_fallthru
    _
  // Predicated region
  $region74: #{ptc_map_pressure.1} parent=0 // pred_check
    _
  $region75: #{ptc_map_pressure.1} parent=0 // pred_check_branch
    %61 = sbr.rel (0) target = $region77
  $region76: #{ptc_map_pressure.1} parent=0 // pred_region
    _
  $region77: #{ptc_map_pressure.1} parent=0 // pred_fallthru
    _
  %v62 = vld [vmem:[%s0] sm:$0x3f]
  %v63 = vld [vmem:[%s1] sm:$0xff]
  %v64 = vld [vmem:[%s1 + $0x8] sm:$0xff]
  %v65 = vld [vmem:[%s1 + $0x10] sm:$0xff]
  %v66 = vld [vmem:[%s1 + $0x18] sm:$0xff]
  %v67 = vld [vmem:[%s2] sm:$0xff]
  %v68 = vld [vmem:[%s2 + $0x8] sm:$0xff]
  %v69 = vld [vmem:[%s2 + $0x10] sm:$0xff]
  %v70 = vld [vmem:[%s2 + $0x18] sm:$0xff]
  %72 = vset.pattern.permute.xlu0 0
  %73 = vperm.xlu0 %72, %v67
  %v74 = vpop.permute.xlu0 %73
  %77 = vset.pattern.permute.xlu0 0
  %78 = vperm.xlu0 %77, %v68
  %v79 = vpop.permute.xlu0 %78
  %82 = vset.pattern.permute.xlu0 0
  %83 = vperm.xlu0 %82, %v69
  %v84 = vpop.permute.xlu0 %83
  %87 = vset.pattern.permute.xlu0 0
  %88 = vperm.xlu0 %87, %v70
  %v89 = vpop.permute.xlu0 %88
  %vm91 = vcmask 48128
  %v93 = vsel %vm91, %v63, 0
  %v96 = vsel %vm91, %v64, 0
  %v99 = vsel %vm91, %v65, 0
  %v102 = vsel %vm91, %v66, 0
  %vm104 = vcmask 1045504
  %v106 = vsel %vm104, %v62, 0
  %108 = vmatprep.subr.mxu0 0.0
  %109 = vmatpush1.msra.mxu0 %v106
  %110 = vmatprep.subr.mxu0 0.0
  %111 = vmatpush1.msra.mxu0 0.0
  %112 = vmatprep.subr.mxu0 0.0
  %113 = vmatpush1.msra.mxu0 0.0
  %114 = vmatprep.subr.mxu0 0.0
  %115 = vmatpush1.msra.mxu0 0.0
  %116 = vmatprep.subr.mxu0 0.0
  %117 = vmatpush1.msra.mxu0 0.0
  %118 = vmatprep.subr.mxu0 0.0
  %119 = vmatpush1.msra.mxu0 0.0
  %120 = vmatprep.subr.mxu0 0.0
  %121 = vmatpush1.msra.mxu0 0.0
  %122 = vmatprep.subr.mxu0 0.0
  %123 = vmatpush1.msra.mxu0 0.0
  %124 = vmatprep.subr.mxu0 0.0
  %125 = vmatpush1.msra.mxu0 0.0
  %126 = vmatprep.subr.mxu0 0.0
  %127 = vmatpush1.msra.mxu0 0.0
  %128 = vmatprep.subr.mxu0 0.0
  %129 = vmatpush1.msra.mxu0 0.0
  %130 = vmatprep.subr.mxu0 0.0
  %131 = vmatpush1.msra.mxu0 0.0
  %132 = vmatprep.subr.mxu0 0.0
  %133 = vmatpush1.msra.mxu0 0.0
  %134 = vmatprep.subr.mxu0 0.0
  %135 = vmatpush1.msra.mxu0 0.0
  %136 = vmatprep.subr.mxu0 0.0
  %137 = vmatpush1.msra.mxu0 0.0
  %138 = vmatprep.subr.mxu0 0.0
  %139 = vmatpush1.msra.mxu0 0.0
  %140 = vmatprep.subr.mxu0 0.0
  %141 = vmatpush1.msra.mxu0 0.0
  %142 = vmatprep.subr.mxu0 0.0
  %143 = vmatpush1.msra.mxu0 0.0
  %144 = vmatprep.subr.mxu0 0.0
  %145 = vmatpush1.msra.mxu0 0.0
  %146 = vmatprep.subr.mxu0 0.0
  %147 = vmatpush1.msra.mxu0 0.0
  %148 = vmatprep.subr.mxu0 0.0
  %149 = vmatpush1.msra.mxu0 0.0
  %150 = vmatprep.subr.mxu0 0.0
  %151 = vmatpush1.msra.mxu0 0.0
  %152 = vmatprep.subr.mxu0 0.0
  %153 = vmatpush1.msra.mxu0 0.0
  %154 = vmatprep.subr.mxu0 0.0
  %155 = vmatpush1.msra.mxu0 0.0
  %156 = vmatprep.subr.mxu0 0.0
  %157 = vmatpush1.msra.mxu0 0.0
  %158 = vmatprep.subr.mxu0 0.0
  %159 = vmatpush1.msra.mxu0 0.0
  %160 = vmatprep.subr.mxu0 0.0
  %161 = vmatpush1.msra.mxu0 0.0
  %162 = vmatprep.subr.mxu0 0.0
  %163 = vmatpush1.msra.mxu0 0.0
  %164 = vmatprep.subr.mxu0 0.0
  %165 = vmatpush1.msra.mxu0 0.0
  %166 = vmatprep.subr.mxu0 0.0
  %167 = vmatpush1.msra.mxu0 0.0
  %168 = vmatprep.subr.mxu0 0.0
  %169 = vmatpush1.msra.mxu0 0.0
  %170 = vmatprep.subr.mxu0 0.0
  %171 = vmatpush1.msra.mxu0 0.0
  %172 = vmatprep.mubr.f32.mxu0 0.0
  %173 = vmatmul.mubr.f32.gmra.mrb[0].mxu0 %v93
  %v174 = vpop.f32.mrb[0].mxu0
  %v175 = vadd.f32 %v74, %v174
  %v176 = vpop.f32.mrb[0].mxu0
  %177 = vmatprep.mubr.f32.mxu0 0.0
  %178 = vmatmul.mubr.f32.gmra.mrb[0].mxu0 %v96
  %v179 = vpop.f32.mrb[0].mxu0
  %v180 = vadd.f32 %v79, %v179
  %v181 = vpop.f32.mrb[0].mxu0
  %182 = vmatprep.mubr.f32.mxu0 0.0
  %183 = vmatmul.mubr.f32.gmra.mrb[0].mxu0 %v99
  %v184 = vpop.f32.mrb[0].mxu0
  %v185 = vadd.f32 %v84, %v184
  %v186 = vpop.f32.mrb[0].mxu0
  %187 = vmatprep.mubr.f32.mxu0 0.0
  %188 = vmatmul.mubr.f32.gmra.mrb[0].mxu0 %v102
  %v189 = vpop.f32.mrb[0].mxu0
  %v190 = vadd.f32 %v89, %v189
  %v191 = vpop.f32.mrb[0].mxu0
  %192 = vdwg.mxu0
  %v193 = vadd.f32 %v175, %v180
  %v194 = vadd.f32 %v193, %v185
  %v195 = vadd.f32 %v194, %v190
  %v196 = vrot.slane %v195, 4
  %v197 = vadd.f32 %v195, %v196
  %v198 = vrot.slane %v197, 2
  %v199 = vadd.f32 %v197, %v198
  %v200 = vrot.slane %v199, 1
  %v201 = vadd.f32 %v199, %v200
  %v202 = vrcp.pop 32.0
  %v203 = vmul.f32 %v201, %v202
  %v204 = vsub.f32 %v175, %v203
  %v205 = vsub.f32 %v180, %v203
  %v206 = vsub.f32 %v185, %v203
  %v207 = vsub.f32 %v190, %v203
  %v208 = vmul.f32 %v204, %v204
  %v209 = vmul.f32 %v205, %v205
  %v210 = vmul.f32 %v206, %v206
  %v211 = vmul.f32 %v207, %v207
  %v212 = vadd.f32 %v208, %v209
  %v213 = vadd.f32 %v212, %v210
  %v214 = vadd.f32 %v213, %v211
  %v215 = vrot.slane %v214, 4
  %v216 = vadd.f32 %v214, %v215
  %v217 = vrot.slane %v216, 2
  %v218 = vadd.f32 %v216, %v217
  %v219 = vrot.slane %v218, 1
  %v220 = vadd.f32 %v218, %v219
  %v221 = vmul.f32 %v220, %v202
  %v222 = vadd.f32 %v221, 1e-05
  %v223 = vrsqrt.pop %v222
  %v224 = vmul.f32 %v204, %v223
  %v225 = vmul.f32 %v205, %v223
  %v226 = vmul.f32 %v206, %v223
  %v227 = vmul.f32 %v207, %v223
  %v228 = vld [vmem:[%s3] sm:$0xff]
  %v229 = vld [vmem:[%s3 + $0x8] sm:$0xff]
  %v230 = vld [vmem:[%s3 + $0x10] sm:$0xff]
  %v231 = vld [vmem:[%s3 + $0x18] sm:$0xff]
  %233 = vset.pattern.permute.xlu0 0
  %234 = vperm.xlu0 %233, %v228
  %v235 = vpop.permute.xlu0 %234
  %238 = vset.pattern.permute.xlu0 0
  %239 = vperm.xlu0 %238, %v229
  %v240 = vpop.permute.xlu0 %239
  %243 = vset.pattern.permute.xlu0 0
  %244 = vperm.xlu0 %243, %v230
  %v245 = vpop.permute.xlu0 %244
  %248 = vset.pattern.permute.xlu0 0
  %249 = vperm.xlu0 %248, %v231
  %v250 = vpop.permute.xlu0 %249
  %v252 = vmul.f32 %v224, %v235
  %v253 = vmul.f32 %v225, %v240
  %v254 = vmul.f32 %v226, %v245
  %v255 = vmul.f32 %v227, %v250
  %v256 = vld [vmem:[%s4] sm:$0xff]
  %v257 = vld [vmem:[%s4 + $0x8] sm:$0xff]
  %v258 = vld [vmem:[%s4 + $0x10] sm:$0xff]
  %v259 = vld [vmem:[%s4 + $0x18] sm:$0xff]
  %261 = vset.pattern.permute.xlu0 0
  %262 = vperm.xlu0 %261, %v256
  %v263 = vpop.permute.xlu0 %262
  %266 = vset.pattern.permute.xlu0 0
  %267 = vperm.xlu0 %266, %v257
  %v268 = vpop.permute.xlu0 %267
  %271 = vset.pattern.permute.xlu0 0
  %272 = vperm.xlu0 %271, %v258
  %v273 = vpop.permute.xlu0 %272
  %276 = vset.pattern.permute.xlu0 0
  %277 = vperm.xlu0 %276, %v259
  %v278 = vpop.permute.xlu0 %277
  %v280 = vadd.f32 %v252, %v263
  %v281 = vadd.f32 %v253, %v268
  %v282 = vadd.f32 %v254, %v273
  %v283 = vadd.f32 %v255, %v278
  %v284 = vmul.f32 %v280, 0.5
  %v285 = vmul.f32 %v281, 0.5
  %v286 = vmul.f32 %v282, 0.5
  %v287 = vmul.f32 %v283, 0.5
  %v288 = vmul.f32 %v280, 0.70710677
  %v289 = vmul.f32 %v281, 0.70710677
  %v290 = vmul.f32 %v282, 0.70710677
  %v291 = vmul.f32 %v283, 0.70710677
  %v292 = verf.f32.pop %v288
  %v293 = verf.f32.pop %v289
  %v294 = verf.f32.pop %v290
  %v295 = verf.f32.pop %v291
  %v296 = vadd.f32 %v292, 1.0
  %v297 = vadd.f32 %v293, 1.0
  %v298 = vadd.f32 %v294, 1.0
  %v299 = vadd.f32 %v295, 1.0
  %v300 = vmul.f32 %v284, %v296
  %v301 = vmul.f32 %v285, %v297
  %v302 = vmul.f32 %v286, %v298
  %v303 = vmul.f32 %v287, %v299
  %v304 = vld [vmem:[%s5] sm:$0xff]
  %v305 = vld [vmem:[%s5 + $0x8] sm:$0xff]
  %v306 = vld [vmem:[%s5 + $0x10] sm:$0xff]
  %v307 = vld [vmem:[%s5 + $0x18] sm:$0xff]
  %v308 = vld [vmem:[%s6] sm:$0xff]
  %v309 = vld [vmem:[%s6 + $0x8] sm:$0xff]
  %v310 = vld [vmem:[%s6 + $0x10] sm:$0xff]
  %v311 = vld [vmem:[%s6 + $0x18] sm:$0xff]
  %313 = vset.pattern.permute.xlu0 0
  %314 = vperm.xlu0 %313, %v308
  %v315 = vpop.permute.xlu0 %314
  %318 = vset.pattern.permute.xlu0 0
  %319 = vperm.xlu0 %318, %v309
  %v320 = vpop.permute.xlu0 %319
  %323 = vset.pattern.permute.xlu0 0
  %324 = vperm.xlu0 %323, %v310
  %v325 = vpop.permute.xlu0 %324
  %328 = vset.pattern.permute.xlu0 0
  %329 = vperm.xlu0 %328, %v311
  %v330 = vpop.permute.xlu0 %329
  %vm332 = vcmask 261120
  %v334 = vsel %vm332, %v304, 0
  %v337 = vsel %vm332, %v305, 0
  %v340 = vsel %vm332, %v306, 0
  %v343 = vsel %vm332, %v307, 0
  %345 = vmatprep.subr.mxu0 0.0
  %346 = vmatpush1.msra.mxu0 %v300
  %347 = vmatprep.subr.mxu0 0.0
  %348 = vmatpush1.msra.mxu0 %v301
  %349 = vmatprep.subr.mxu0 0.0
  %350 = vmatpush1.msra.mxu0 %v302
  %351 = vmatprep.subr.mxu0 0.0
  %352 = vmatpush1.msra.mxu0 %v303
  %353 = vmatprep.subr.mxu0 0.0
  %354 = vmatpush1.msra.mxu0 0.0
  %355 = vmatprep.subr.mxu0 0.0
  %356 = vmatpush1.msra.mxu0 0.0
  %357 = vmatprep.subr.mxu0 0.0
  %358 = vmatpush1.msra.mxu0 0.0
  %359 = vmatprep.subr.mxu0 0.0
  %360 = vmatpush1.msra.mxu0 0.0
  %361 = vmatprep.subr.mxu0 0.0
  %362 = vmatpush1.msra.mxu0 0.0
  %363 = vmatprep.subr.mxu0 0.0
  %364 = vmatpush1.msra.mxu0 0.0
  %365 = vmatprep.subr.mxu0 0.0
  %366 = vmatpush1.msra.mxu0 0.0
  %367 = vmatprep.subr.mxu0 0.0
  %368 = vmatpush1.msra.mxu0 0.0
  %369 = vmatprep.subr.mxu0 0.0
  %370 = vmatpush1.msra.mxu0 0.0
  %371 = vmatprep.subr.mxu0 0.0
  %372 = vmatpush1.msra.mxu0 0.0
  %373 = vmatprep.subr.mxu0 0.0
  %374 = vmatpush1.msra.mxu0 0.0
  %375 = vmatprep.subr.mxu0 0.0
  %376 = vmatpush1.msra.mxu0 0.0
  %377 = vmatprep.subr.mxu0 0.0
  %378 = vmatpush1.msra.mxu0 0.0
  %379 = vmatprep.subr.mxu0 0.0
  %380 = vmatpush1.msra.mxu0 0.0
  %381 = vmatprep.subr.mxu0 0.0
  %382 = vmatpush1.msra.mxu0 0.0
  %383 = vmatprep.subr.mxu0 0.0
  %384 = vmatpush1.msra.mxu0 0.0
  %385 = vmatprep.subr.mxu0 0.0
  %386 = vmatpush1.msra.mxu0 0.0
  %387 = vmatprep.subr.mxu0 0.0
  %388 = vmatpush1.msra.mxu0 0.0
  %389 = vmatprep.subr.mxu0 0.0
  %390 = vmatpush1.msra.mxu0 0.0
  %391 = vmatprep.subr.mxu0 0.0
  %392 = vmatpush1.msra.mxu0 0.0
  %393 = vmatprep.subr.mxu0 0.0
  %394 = vmatpush1.msra.mxu0 0.0
  %395 = vmatprep.subr.mxu0 0.0
  %396 = vmatpush1.msra.mxu0 0.0
  %397 = vmatprep.subr.mxu0 0.0
  %398 = vmatpush1.msra.mxu0 0.0
  %399 = vmatprep.subr.mxu0 0.0
  %400 = vmatpush1.msra.mxu0 0.0
  %401 = vmatprep.subr.mxu0 0.0
  %402 = vmatpush1.msra.mxu0 0.0
  %403 = vmatprep.subr.mxu0 0.0
  %404 = vmatpush1.msra.mxu0 0.0
  %405 = vmatprep.subr.mxu0 0.0
  %406 = vmatpush1.msra.mxu0 0.0
  %407 = vmatprep.subr.mxu0 0.0
  %408 = vmatpush1.msra.mxu0 0.0
  %409 = vmatprep.mubr.f32.mxu0 0.0
  %410 = vmatmul.mubr.f32.gmra.mrb[0].mxu0 %v334
  %v411 = vpop.f32.mrb[0].mxu0
  %v412 = vadd.f32 %v315, %v411
  %v413 = vpop.f32.mrb[0].mxu0
  %414 = vmatprep.mubr.f32.mxu0 0.0
  %415 = vmatmul.mubr.f32.gmra.mrb[0].mxu0 %v337
  %v416 = vpop.f32.mrb[0].mxu0
  %v417 = vadd.f32 %v320, %v416
  %v418 = vpop.f32.mrb[0].mxu0
  %419 = vmatprep.mubr.f32.mxu0 0.0
  %420 = vmatmul.mubr.f32.gmra.mrb[0].mxu0 %v340
  %v421 = vpop.f32.mrb[0].mxu0
  %v422 = vadd.f32 %v325, %v421
  %v423 = vpop.f32.mrb[0].mxu0
  %424 = vmatprep.mubr.f32.mxu0 0.0
  %425 = vmatmul.mubr.f32.gmra.mrb[0].mxu0 %v343
  %v426 = vpop.f32.mrb[0].mxu0
  %v427 = vadd.f32 %v330, %v426
  %v428 = vpop.f32.mrb[0].mxu0
  %429 = vdwg.mxu0
  %v430 = vadd.f32 %v412, %v417
  %v431 = vadd.f32 %v430, %v422
  %v432 = vadd.f32 %v431, %v427
  %v433 = vrot.slane %v432, 4
  %v434 = vadd.f32 %v432, %v433
  %v435 = vrot.slane %v434, 2
  %v436 = vadd.f32 %v434, %v435
  %v437 = vrot.slane %v436, 1
  %v438 = vadd.f32 %v436, %v437
  %v439 = vmul.f32 %v438, %v202
  %v440 = vsub.f32 %v412, %v439
  %v441 = vsub.f32 %v417, %v439
  %v442 = vsub.f32 %v422, %v439
  %v443 = vsub.f32 %v427, %v439
  %v444 = vmul.f32 %v440, %v440
  %v445 = vmul.f32 %v441, %v441
  %v446 = vmul.f32 %v442, %v442
  %v447 = vmul.f32 %v443, %v443
  %v448 = vadd.f32 %v444, %v445
  %v449 = vadd.f32 %v448, %v446
  %v450 = vadd.f32 %v449, %v447
  %v451 = vrot.slane %v450, 4
  %v452 = vadd.f32 %v450, %v451
  %v453 = vrot.slane %v452, 2
  %v454 = vadd.f32 %v452, %v453
  %v455 = vrot.slane %v454, 1
  %v456 = vadd.f32 %v454, %v455
  %v457 = vmul.f32 %v456, %v202
  %v458 = vadd.f32 %v457, 1e-05
  %v459 = vrsqrt.pop %v458
  %v460 = vmul.f32 %v440, %v459
  %v461 = vmul.f32 %v441, %v459
  %v462 = vmul.f32 %v442, %v459
  %v463 = vmul.f32 %v443, %v459
  %v464 = vld [vmem:[%s7] sm:$0xff]
  %v465 = vld [vmem:[%s7 + $0x8] sm:$0xff]
  %v466 = vld [vmem:[%s7 + $0x10] sm:$0xff]
  %v467 = vld [vmem:[%s7 + $0x18] sm:$0xff]
  %469 = vset.pattern.permute.xlu0 0
  %470 = vperm.xlu0 %469, %v464
  %v471 = vpop.permute.xlu0 %470
  %474 = vset.pattern.permute.xlu0 0
  %475 = vperm.xlu0 %474, %v465
  %v476 = vpop.permute.xlu0 %475
  %479 = vset.pattern.permute.xlu0 0
  %480 = vperm.xlu0 %479, %v466
  %v481 = vpop.permute.xlu0 %480
  %484 = vset.pattern.permute.xlu0 0
  %485 = vperm.xlu0 %484, %v467
  %v486 = vpop.permute.xlu0 %485
  %v488 = vmul.f32 %v460, %v471
  %v489 = vmul.f32 %v461, %v476
  %v490 = vmul.f32 %v462, %v481
  %v491 = vmul.f32 %v463, %v486
  %v492 = vld [vmem:[%s8] sm:$0xff]
  %v493 = vld [vmem:[%s8 + $0x8] sm:$0xff]
  %v494 = vld [vmem:[%s8 + $0x10] sm:$0xff]
  %v495 = vld [vmem:[%s8 + $0x18] sm:$0xff]
  %497 = vset.pattern.permute.xlu0 0
  %498 = vperm.xlu0 %497, %v492
  %v499 = vpop.permute.xlu0 %498
  %502 = vset.pattern.permute.xlu0 0
  %503 = vperm.xlu0 %502, %v493
  %v504 = vpop.permute.xlu0 %503
  %507 = vset.pattern.permute.xlu0 0
  %508 = vperm.xlu0 %507, %v494
  %v509 = vpop.permute.xlu0 %508
  %512 = vset.pattern.permute.xlu0 0
  %513 = vperm.xlu0 %512, %v495
  %v514 = vpop.permute.xlu0 %513
  %v516 = vadd.f32 %v488, %v499
  %v517 = vadd.f32 %v489, %v504
  %v518 = vadd.f32 %v490, %v509
  %v519 = vadd.f32 %v491, %v514
  %v520 = vmul.f32 %v516, 0.5
  %v521 = vmul.f32 %v517, 0.5
  %v522 = vmul.f32 %v518, 0.5
  %v523 = vmul.f32 %v519, 0.5
  %v524 = vmul.f32 %v516, 0.70710677
  %v525 = vmul.f32 %v517, 0.70710677
  %v526 = vmul.f32 %v518, 0.70710677
  %v527 = vmul.f32 %v519, 0.70710677
  %v528 = verf.f32.pop %v524
  %v529 = verf.f32.pop %v525
  %v530 = verf.f32.pop %v526
  %v531 = verf.f32.pop %v527
  %v532 = vadd.f32 %v528, 1.0
  %v533 = vadd.f32 %v529, 1.0
  %v534 = vadd.f32 %v530, 1.0
  %v535 = vadd.f32 %v531, 1.0
  %v536 = vmul.f32 %v520, %v532
  %v537 = vmul.f32 %v521, %v533
  %v538 = vmul.f32 %v522, %v534
  %v539 = vmul.f32 %v523, %v535
  %v540 = vld [vmem:[%s9] sm:$0xff]
  %v541 = vld [vmem:[%s9 + $0x8] sm:$0xff]
  %v542 = vld [vmem:[%s9 + $0x10] sm:$0xff]
  %v543 = vld [vmem:[%s9 + $0x18] sm:$0xff]
  %v544 = vld [vmem:[%s10] sm:$0xff]
  %v545 = vld [vmem:[%s10 + $0x8] sm:$0xff]
  %v546 = vld [vmem:[%s10 + $0x10] sm:$0xff]
  %v547 = vld [vmem:[%s10 + $0x18] sm:$0xff]
  %549 = vset.pattern.permute.xlu0 0
  %550 = vperm.xlu0 %549, %v544
  %v551 = vpop.permute.xlu0 %550
  %554 = vset.pattern.permute.xlu0 0
  %555 = vperm.xlu0 %554, %v545
  %v556 = vpop.permute.xlu0 %555
  %559 = vset.pattern.permute.xlu0 0
  %560 = vperm.xlu0 %559, %v546
  %v561 = vpop.permute.xlu0 %560
  %564 = vset.pattern.permute.xlu0 0
  %565 = vperm.xlu0 %564, %v547
  %v566 = vpop.permute.xlu0 %565
  %v569 = vsel %vm332, %v540, 0
  %v572 = vsel %vm332, %v541, 0
  %v575 = vsel %vm332, %v542, 0
  %v578 = vsel %vm332, %v543, 0
  %580 = vmatprep.subr.mxu0 0.0
  %581 = vmatpush1.msra.mxu0 %v536
  %582 = vmatprep.subr.mxu0 0.0
  %583 = vmatpush1.msra.mxu0 %v537
  %584 = vmatprep.subr.mxu0 0.0
  %585 = vmatpush1.msra.mxu0 %v538
  %586 = vmatprep.subr.mxu0 0.0
  %587 = vmatpush1.msra.mxu0 %v539
  %588 = vmatprep.subr.mxu0 0.0
  %589 = vmatpush1.msra.mxu0 0.0
  %590 = vmatprep.subr.mxu0 0.0
  %591 = vmatpush1.msra.mxu0 0.0
  %592 = vmatprep.subr.mxu0 0.0
  %593 = vmatpush1.msra.mxu0 0.0
  %594 = vmatprep.subr.mxu0 0.0
  %595 = vmatpush1.msra.mxu0 0.0
  %596 = vmatprep.subr.mxu0 0.0
  %597 = vmatpush1.msra.mxu0 0.0
  %598 = vmatprep.subr.mxu0 0.0
  %599 = vmatpush1.msra.mxu0 0.0
  %600 = vmatprep.subr.mxu0 0.0
  %601 = vmatpush1.msra.mxu0 0.0
  %602 = vmatprep.subr.mxu0 0.0
  %603 = vmatpush1.msra.mxu0 0.0
  %604 = vmatprep.subr.mxu0 0.0
  %605 = vmatpush1.msra.mxu0 0.0
  %606 = vmatprep.subr.mxu0 0.0
  %607 = vmatpush1.msra.mxu0 0.0
  %608 = vmatprep.subr.mxu0 0.0
  %609 = vmatpush1.msra.mxu0 0.0
  %610 = vmatprep.subr.mxu0 0.0
  %611 = vmatpush1.msra.mxu0 0.0
  %612 = vmatprep.subr.mxu0 0.0
  %613 = vmatpush1.msra.mxu0 0.0
  %614 = vmatprep.subr.mxu0 0.0
  %615 = vmatpush1.msra.mxu0 0.0
  %616 = vmatprep.subr.mxu0 0.0
  %617 = vmatpush1.msra.mxu0 0.0
  %618 = vmatprep.subr.mxu0 0.0
  %619 = vmatpush1.msra.mxu0 0.0
  %620 = vmatprep.subr.mxu0 0.0
  %621 = vmatpush1.msra.mxu0 0.0
  %622 = vmatprep.subr.mxu0 0.0
  %623 = vmatpush1.msra.mxu0 0.0
  %624 = vmatprep.subr.mxu0 0.0
  %625 = vmatpush1.msra.mxu0 0.0
  %626 = vmatprep.subr.mxu0 0.0
  %627 = vmatpush1.msra.mxu0 0.0
  %628 = vmatprep.subr.mxu0 0.0
  %629 = vmatpush1.msra.mxu0 0.0
  %630 = vmatprep.subr.mxu0 0.0
  %631 = vmatpush1.msra.mxu0 0.0
  %632 = vmatprep.subr.mxu0 0.0
  %633 = vmatpush1.msra.mxu0 0.0
  %634 = vmatprep.subr.mxu0 0.0
  %635 = vmatpush1.msra.mxu0 0.0
  %636 = vmatprep.subr.mxu0 0.0
  %637 = vmatpush1.msra.mxu0 0.0
  %638 = vmatprep.subr.mxu0 0.0
  %639 = vmatpush1.msra.mxu0 0.0
  %640 = vmatprep.subr.mxu0 0.0
  %641 = vmatpush1.msra.mxu0 0.0
  %642 = vmatprep.subr.mxu0 0.0
  %643 = vmatpush1.msra.mxu0 0.0
  %644 = vmatprep.mubr.f32.mxu0 0.0
  %645 = vmatmul.mubr.f32.gmra.mrb[0].mxu0 %v569
  %v646 = vpop.f32.mrb[0].mxu0
  %v647 = vadd.f32 %v551, %v646
  %v648 = vpop.f32.mrb[0].mxu0
  %649 = vmatprep.mubr.f32.mxu0 0.0
  %650 = vmatmul.mubr.f32.gmra.mrb[0].mxu0 %v572
  %v651 = vpop.f32.mrb[0].mxu0
  %v652 = vadd.f32 %v556, %v651
  %v653 = vpop.f32.mrb[0].mxu0
  %654 = vmatprep.mubr.f32.mxu0 0.0
  %655 = vmatmul.mubr.f32.gmra.mrb[0].mxu0 %v575
  %v656 = vpop.f32.mrb[0].mxu0
  %v657 = vadd.f32 %v561, %v656
  %v658 = vpop.f32.mrb[0].mxu0
  %659 = vmatprep.mubr.f32.mxu0 0.0
  %660 = vmatmul.mubr.f32.gmra.mrb[0].mxu0 %v578
  %v661 = vpop.f32.mrb[0].mxu0
  %v662 = vadd.f32 %v566, %v661
  %v663 = vpop.f32.mrb[0].mxu0
  %664 = vdwg.mxu0
  %v665 = vadd.f32 %v647, %v652
  %v666 = vadd.f32 %v665, %v657
  %v667 = vadd.f32 %v666, %v662
  %v668 = vrot.slane %v667, 4
  %v669 = vadd.f32 %v667, %v668
  %v670 = vrot.slane %v669, 2
  %v671 = vadd.f32 %v669, %v670
  %v672 = vrot.slane %v671, 1
  %v673 = vadd.f32 %v671, %v672
  %v674 = vmul.f32 %v673, %v202
  %v675 = vsub.f32 %v647, %v674
  %v676 = vsub.f32 %v652, %v674
  %v677 = vsub.f32 %v657, %v674
  %v678 = vsub.f32 %v662, %v674
  %v679 = vmul.f32 %v675, %v675
  %v680 = vmul.f32 %v676, %v676
  %v681 = vmul.f32 %v677, %v677
  %v682 = vmul.f32 %v678, %v678
  %v683 = vadd.f32 %v679, %v680
  %v684 = vadd.f32 %v683, %v681
  %v685 = vadd.f32 %v684, %v682
  %v686 = vrot.slane %v685, 4
  %v687 = vadd.f32 %v685, %v686
  %v688 = vrot.slane %v687, 2
  %v689 = vadd.f32 %v687, %v688
  %v690 = vrot.slane %v689, 1
  %v691 = vadd.f32 %v689, %v690
  %v692 = vmul.f32 %v691, %v202
  %v693 = vadd.f32 %v692, 1e-05
  %v694 = vrsqrt.pop %v693
  %v695 = vmul.f32 %v675, %v694
  %v696 = vmul.f32 %v676, %v694
  %v697 = vmul.f32 %v677, %v694
  %v698 = vmul.f32 %v678, %v694
  %v699 = vld [vmem:[%s11] sm:$0xff]
  %v700 = vld [vmem:[%s11 + $0x8] sm:$0xff]
  %v701 = vld [vmem:[%s11 + $0x10] sm:$0xff]
  %v702 = vld [vmem:[%s11 + $0x18] sm:$0xff]
  %704 = vset.pattern.permute.xlu0 0
  %705 = vperm.xlu0 %704, %v699
  %v706 = vpop.permute.xlu0 %705
  %709 = vset.pattern.permute.xlu0 0
  %710 = vperm.xlu0 %709, %v700
  %v711 = vpop.permute.xlu0 %710
  %714 = vset.pattern.permute.xlu0 0
  %715 = vperm.xlu0 %714, %v701
  %v716 = vpop.permute.xlu0 %715
  %719 = vset.pattern.permute.xlu0 0
  %720 = vperm.xlu0 %719, %v702
  %v721 = vpop.permute.xlu0 %720
  %v723 = vmul.f32 %v695, %v706
  %v724 = vmul.f32 %v696, %v711
  %v725 = vmul.f32 %v697, %v716
  %v726 = vmul.f32 %v698, %v721
  %v727 = vld [vmem:[%s12] sm:$0xff]
  %v728 = vld [vmem:[%s12 + $0x8] sm:$0xff]
  %v729 = vld [vmem:[%s12 + $0x10] sm:$0xff]
  %v730 = vld [vmem:[%s12 + $0x18] sm:$0xff]
  %732 = vset.pattern.permute.xlu0 0
  %733 = vperm.xlu0 %732, %v727
  %v734 = vpop.permute.xlu0 %733
  %737 = vset.pattern.permute.xlu0 0
  %738 = vperm.xlu0 %737, %v728
  %v739 = vpop.permute.xlu0 %738
  %742 = vset.pattern.permute.xlu0 0
  %743 = vperm.xlu0 %742, %v729
  %v744 = vpop.permute.xlu0 %743
  %747 = vset.pattern.permute.xlu0 0
  %748 = vperm.xlu0 %747, %v730
  %v749 = vpop.permute.xlu0 %748
  %v751 = vadd.f32 %v723, %v734
  %v752 = vadd.f32 %v724, %v739
  %v753 = vadd.f32 %v725, %v744
  %v754 = vadd.f32 %v726, %v749
  %v755 = vmul.f32 %v751, 0.5
  %v756 = vmul.f32 %v752, 0.5
  %v757 = vmul.f32 %v753, 0.5
  %v758 = vmul.f32 %v754, 0.5
  %v759 = vmul.f32 %v751, 0.70710677
  %v760 = vmul.f32 %v752, 0.70710677
  %v761 = vmul.f32 %v753, 0.70710677
  %v762 = vmul.f32 %v754, 0.70710677
  %v763 = verf.f32.pop %v759
  %v764 = verf.f32.pop %v760
  %v765 = verf.f32.pop %v761
  %v766 = verf.f32.pop %v762
  %v767 = vadd.f32 %v763, 1.0
  %v768 = vadd.f32 %v764, 1.0
  %v769 = vadd.f32 %v765, 1.0
  %v770 = vadd.f32 %v766, 1.0
  %v771 = vmul.f32 %v755, %v767
  %v772 = vmul.f32 %v756, %v768
  %v773 = vmul.f32 %v757, %v769
  %v774 = vmul.f32 %v758, %v770
  %v775 = vld [vmem:[%s13] sm:$0xff]
  %v776 = vld [vmem:[%s13 + $0x8] sm:$0xff]
  %v777 = vld [vmem:[%s13 + $0x10] sm:$0xff]
  %v778 = vld [vmem:[%s13 + $0x18] sm:$0xff]
  %v779 = vld [vmem:[%s14] sm:$0xff]
  %v780 = vld [vmem:[%s14 + $0x8] sm:$0xff]
  %v781 = vld [vmem:[%s14 + $0x10] sm:$0xff]
  %v782 = vld [vmem:[%s14 + $0x18] sm:$0xff]
  %784 = vset.pattern.permute.xlu0 0
  %785 = vperm.xlu0 %784, %v779
  %v786 = vpop.permute.xlu0 %785
  %789 = vset.pattern.permute.xlu0 0
  %790 = vperm.xlu0 %789, %v780
  %v791 = vpop.permute.xlu0 %790
  %794 = vset.pattern.permute.xlu0 0
  %795 = vperm.xlu0 %794, %v781
  %v796 = vpop.permute.xlu0 %795
  %799 = vset.pattern.permute.xlu0 0
  %800 = vperm.xlu0 %799, %v782
  %v801 = vpop.permute.xlu0 %800
  %v804 = vsel %vm332, %v775, 0
  %v807 = vsel %vm332, %v776, 0
  %v810 = vsel %vm332, %v777, 0
  %v813 = vsel %vm332, %v778, 0
  %815 = vmatprep.subr.mxu0 0.0
  %816 = vmatpush1.msra.mxu0 %v771
  %817 = vmatprep.subr.mxu0 0.0
  %818 = vmatpush1.msra.mxu0 %v772
  %819 = vmatprep.subr.mxu0 0.0
  %820 = vmatpush1.msra.mxu0 %v773
  %821 = vmatprep.subr.mxu0 0.0
  %822 = vmatpush1.msra.mxu0 %v774
  %823 = vmatprep.subr.mxu0 0.0
  %824 = vmatpush1.msra.mxu0 0.0
  %825 = vmatprep.subr.mxu0 0.0
  %826 = vmatpush1.msra.mxu0 0.0
  %827 = vmatprep.subr.mxu0 0.0
  %828 = vmatpush1.msra.mxu0 0.0
  %829 = vmatprep.subr.mxu0 0.0
  %830 = vmatpush1.msra.mxu0 0.0
  %831 = vmatprep.subr.mxu0 0.0
  %832 = vmatpush1.msra.mxu0 0.0
  %833 = vmatprep.subr.mxu0 0.0
  %834 = vmatpush1.msra.mxu0 0.0
  %835 = vmatprep.subr.mxu0 0.0
  %836 = vmatpush1.msra.mxu0 0.0
  %837 = vmatprep.subr.mxu0 0.0
  %838 = vmatpush1.msra.mxu0 0.0
  %839 = vmatprep.subr.mxu0 0.0
  %840 = vmatpush1.msra.mxu0 0.0
  %841 = vmatprep.subr.mxu0 0.0
  %842 = vmatpush1.msra.mxu0 0.0
  %843 = vmatprep.subr.mxu0 0.0
  %844 = vmatpush1.msra.mxu0 0.0
  %845 = vmatprep.subr.mxu0 0.0
  %846 = vmatpush1.msra.mxu0 0.0
  %847 = vmatprep.subr.mxu0 0.0
  %848 = vmatpush1.msra.mxu0 0.0
  %849 = vmatprep.subr.mxu0 0.0
  %850 = vmatpush1.msra.mxu0 0.0
  %851 = vmatprep.subr.mxu0 0.0
  %852 = vmatpush1.msra.mxu0 0.0
  %853 = vmatprep.subr.mxu0 0.0
  %854 = vmatpush1.msra.mxu0 0.0
  %855 = vmatprep.subr.mxu0 0.0
  %856 = vmatpush1.msra.mxu0 0.0
  %857 = vmatprep.subr.mxu0 0.0
  %858 = vmatpush1.msra.mxu0 0.0
  %859 = vmatprep.subr.mxu0 0.0
  %860 = vmatpush1.msra.mxu0 0.0
  %861 = vmatprep.subr.mxu0 0.0
  %862 = vmatpush1.msra.mxu0 0.0
  %863 = vmatprep.subr.mxu0 0.0
  %864 = vmatpush1.msra.mxu0 0.0
  %865 = vmatprep.subr.mxu0 0.0
  %866 = vmatpush1.msra.mxu0 0.0
  %867 = vmatprep.subr.mxu0 0.0
  %868 = vmatpush1.msra.mxu0 0.0
  %869 = vmatprep.subr.mxu0 0.0
  %870 = vmatpush1.msra.mxu0 0.0
  %871 = vmatprep.subr.mxu0 0.0
  %872 = vmatpush1.msra.mxu0 0.0
  %873 = vmatprep.subr.mxu0 0.0
  %874 = vmatpush1.msra.mxu0 0.0
  %875 = vmatprep.subr.mxu0 0.0
  %876 = vmatpush1.msra.mxu0 0.0
  %877 = vmatprep.subr.mxu0 0.0
  %878 = vmatpush1.msra.mxu0 0.0
  %879 = vmatprep.mubr.f32.mxu0 0.0
  %880 = vmatmul.mubr.f32.gmra.mrb[0].mxu0 %v804
  %v881 = vpop.f32.mrb[0].mxu0
  %v882 = vadd.f32 %v786, %v881
  %v883 = vpop.f32.mrb[0].mxu0
  %884 = vmatprep.mubr.f32.mxu0 0.0
  %885 = vmatmul.mubr.f32.gmra.mrb[0].mxu0 %v807
  %v886 = vpop.f32.mrb[0].mxu0
  %v887 = vadd.f32 %v791, %v886
  %v888 = vpop.f32.mrb[0].mxu0
  %889 = vmatprep.mubr.f32.mxu0 0.0
  %890 = vmatmul.mubr.f32.gmra.mrb[0].mxu0 %v810
  %v891 = vpop.f32.mrb[0].mxu0
  %v892 = vadd.f32 %v796, %v891
  %v893 = vpop.f32.mrb[0].mxu0
  %894 = vmatprep.mubr.f32.mxu0 0.0
  %895 = vmatmul.mubr.f32.gmra.mrb[0].mxu0 %v813
  %v896 = vpop.f32.mrb[0].mxu0
  %v897 = vadd.f32 %v801, %v896
  %v898 = vpop.f32.mrb[0].mxu0
  %899 = vdwg.mxu0
  %v900 = vadd.f32 %v882, %v887
  %v901 = vadd.f32 %v900, %v892
  %v902 = vadd.f32 %v901, %v897
  %v903 = vrot.slane %v902, 4
  %v904 = vadd.f32 %v902, %v903
  %v905 = vrot.slane %v904, 2
  %v906 = vadd.f32 %v904, %v905
  %v907 = vrot.slane %v906, 1
  %v908 = vadd.f32 %v906, %v907
  %v909 = vmul.f32 %v908, %v202
  %v910 = vsub.f32 %v882, %v909
  %v911 = vsub.f32 %v887, %v909
  %v912 = vsub.f32 %v892, %v909
  %v913 = vsub.f32 %v897, %v909
  %v914 = vmul.f32 %v910, %v910
  %v915 = vmul.f32 %v911, %v911
  %v916 = vmul.f32 %v912, %v912
  %v917 = vmul.f32 %v913, %v913
  %v918 = vadd.f32 %v914, %v915
  %v919 = vadd.f32 %v918, %v916
  %v920 = vadd.f32 %v919, %v917
  %v921 = vrot.slane %v920, 4
  %v922 = vadd.f32 %v920, %v921
  %v923 = vrot.slane %v922, 2
  %v924 = vadd.f32 %v922, %v923
  %v925 = vrot.slane %v924, 1
  %v926 = vadd.f32 %v924, %v925
  %v927 = vmul.f32 %v926, %v202
  %v928 = vadd.f32 %v927, 1e-05
  %v929 = vrsqrt.pop %v928
  %v930 = vmul.f32 %v910, %v929
  %v931 = vmul.f32 %v911, %v929
  %v932 = vmul.f32 %v912, %v929
  %v933 = vmul.f32 %v913, %v929
  %v934 = vld [vmem:[%s15] sm:$0xff]
  %v935 = vld [vmem:[%s15 + $0x8] sm:$0xff]
  %v936 = vld [vmem:[%s15 + $0x10] sm:$0xff]
  %v937 = vld [vmem:[%s15 + $0x18] sm:$0xff]
  %939 = vset.pattern.permute.xlu0 0
  %940 = vperm.xlu0 %939, %v934
  %v941 = vpop.permute.xlu0 %940
  %944 = vset.pattern.permute.xlu0 0
  %945 = vperm.xlu0 %944, %v935
  %v946 = vpop.permute.xlu0 %945
  %949 = vset.pattern.permute.xlu0 0
  %950 = vperm.xlu0 %949, %v936
  %v951 = vpop.permute.xlu0 %950
  %954 = vset.pattern.permute.xlu0 0
  %955 = vperm.xlu0 %954, %v937
  %v956 = vpop.permute.xlu0 %955
  %v958 = vmul.f32 %v930, %v941
  %v959 = vmul.f32 %v931, %v946
  %v960 = vmul.f32 %v932, %v951
  %v961 = vmul.f32 %v933, %v956
  %v962 = vld [vmem:[%s16] sm:$0xff]
  %v963 = vld [vmem:[%s16 + $0x8] sm:$0xff]
  %v964 = vld [vmem:[%s16 + $0x10] sm:$0xff]
  %v965 = vld [vmem:[%s16 + $0x18] sm:$0xff]
  %967 = vset.pattern.permute.xlu0 0
  %968 = vperm.xlu0 %967, %v962
  %v969 = vpop.permute.xlu0 %968
  %972 = vset.pattern.permute.xlu0 0
  %973 = vperm.xlu0 %972, %v963
  %v974 = vpop.permute.xlu0 %973
  %977 = vset.pattern.permute.xlu0 0
  %978 = vperm.xlu0 %977, %v964
  %v979 = vpop.permute.xlu0 %978
  %982 = vset.pattern.permute.xlu0 0
  %983 = vperm.xlu0 %982, %v965
  %v984 = vpop.permute.xlu0 %983
  %v986 = vadd.f32 %v958, %v969
  %v987 = vadd.f32 %v959, %v974
  %v988 = vadd.f32 %v960, %v979
  %v989 = vadd.f32 %v961, %v984
  %v990 = vmul.f32 %v986, 0.5
  %v991 = vmul.f32 %v987, 0.5
  %v992 = vmul.f32 %v988, 0.5
  %v993 = vmul.f32 %v989, 0.5
  %v994 = vmul.f32 %v986, 0.70710677
  %v995 = vmul.f32 %v987, 0.70710677
  %v996 = vmul.f32 %v988, 0.70710677
  %v997 = vmul.f32 %v989, 0.70710677
  %v998 = verf.f32.pop %v994
  %v999 = verf.f32.pop %v995
  %v1000 = verf.f32.pop %v996
  %v1001 = verf.f32.pop %v997
  %v1002 = vadd.f32 %v998, 1.0
  %v1003 = vadd.f32 %v999, 1.0
  %v1004 = vadd.f32 %v1000, 1.0
  %v1005 = vadd.f32 %v1001, 1.0
  %v1006 = vmul.f32 %v990, %v1002
  %v1007 = vmul.f32 %v991, %v1003
  %v1008 = vmul.f32 %v992, %v1004
  %v1009 = vmul.f32 %v993, %v1005
  %v1010 = vld [vmem:[%s17] sm:$0xff]
  %v1011 = vld [vmem:[%s17 + $0x8] sm:$0xff]
  %v1012 = vld [vmem:[%s17 + $0x10] sm:$0xff]
  %v1013 = vld [vmem:[%s17 + $0x18] sm:$0xff]
  %v1014 = vld [vmem:[%s17 + $0x20] sm:$0xff]
  %v1015 = vld [vmem:[%s17 + $0x28] sm:$0xff]
  %v1016 = vld [vmem:[%s17 + $0x30] sm:$0xff]
  %v1017 = vld [vmem:[%s17 + $0x38] sm:$0xff]
  %v1018 = vld [vmem:[%s17 + $0x40] sm:$0xff]
  %v1019 = vld [vmem:[%s17 + $0x48] sm:$0xff]
  %v1020 = vld [vmem:[%s17 + $0x50] sm:$0xff]
  %v1021 = vld [vmem:[%s17 + $0x58] sm:$0xff]
  %v1022 = vld [vmem:[%s17 + $0x60] sm:$0xff]
  %v1023 = vld [vmem:[%s17 + $0x68] sm:$0xff]
  %v1024 = vld [vmem:[%s17 + $0x70] sm:$0xff]
  %v1025 = vld [vmem:[%s17 + $0x78] sm:$0xff]
  %v1026 = vld [vmem:[%s18] sm:$0xff]
  %v1027 = vld [vmem:[%s18 + $0x8] sm:$0xff]
  %v1028 = vld [vmem:[%s18 + $0x10] sm:$0xff]
  %v1029 = vld [vmem:[%s18 + $0x18] sm:$0xff]
  %v1030 = vld [vmem:[%s18 + $0x20] sm:$0xff]
  %v1031 = vld [vmem:[%s18 + $0x28] sm:$0xff]
  %v1032 = vld [vmem:[%s18 + $0x30] sm:$0xff]
  %v1033 = vld [vmem:[%s18 + $0x38] sm:$0xff]
  %v1034 = vld [vmem:[%s18 + $0x40] sm:$0xff]
  %v1035 = vld [vmem:[%s18 + $0x48] sm:$0xff]
  %v1036 = vld [vmem:[%s18 + $0x50] sm:$0xff]
  %v1037 = vld [vmem:[%s18 + $0x58] sm:$0xff]
  %v1038 = vld [vmem:[%s18 + $0x60] sm:$0xff]
  %v1039 = vld [vmem:[%s18 + $0x68] sm:$0xff]
  %v1040 = vld [vmem:[%s18 + $0x70] sm:$0xff]
  %v1041 = vld [vmem:[%s18 + $0x78] sm:$0xff]
  %1043 = vset.pattern.permute.xlu0 0
  %1044 = vperm.xlu0 %1043, %v1026
  %v1045 = vpop.permute.xlu0 %1044
  %1048 = vset.pattern.permute.xlu0 0
  %1049 = vperm.xlu0 %1048, %v1027
  %v1050 = vpop.permute.xlu0 %1049
  %1053 = vset.pattern.permute.xlu0 0
  %1054 = vperm.xlu0 %1053, %v1028
  %v1055 = vpop.permute.xlu0 %1054
  %1058 = vset.pattern.permute.xlu0 0
  %1059 = vperm.xlu0 %1058, %v1029
  %v1060 = vpop.permute.xlu0 %1059
  %1063 = vset.pattern.permute.xlu0 0
  %1064 = vperm.xlu0 %1063, %v1030
  %v1065 = vpop.permute.xlu0 %1064
  %1068 = vset.pattern.permute.xlu0 0
  %1069 = vperm.xlu0 %1068, %v1031
  %v1070 = vpop.permute.xlu0 %1069
  %1073 = vset.pattern.permute.xlu0 0
  %1074 = vperm.xlu0 %1073, %v1032
  %v1075 = vpop.permute.xlu0 %1074
  %1078 = vset.pattern.permute.xlu0 0
  %1079 = vperm.xlu0 %1078, %v1033
  %v1080 = vpop.permute.xlu0 %1079
  %1083 = vset.pattern.permute.xlu0 0
  %1084 = vperm.xlu0 %1083, %v1034
  %v1085 = vpop.permute.xlu0 %1084
  %1088 = vset.pattern.permute.xlu0 0
  %1089 = vperm.xlu0 %1088, %v1035
  %v1090 = vpop.permute.xlu0 %1089
  %1093 = vset.pattern.permute.xlu0 0
  %1094 = vperm.xlu0 %1093, %v1036
  %v1095 = vpop.permute.xlu0 %1094
  %1098 = vset.pattern.permute.xlu0 0
  %1099 = vperm.xlu0 %1098, %v1037
  %v1100 = vpop.permute.xlu0 %1099
  %1103 = vset.pattern.permute.xlu0 0
  %1104 = vperm.xlu0 %1103, %v1038
  %v1105 = vpop.permute.xlu0 %1104
  %1108 = vset.pattern.permute.xlu0 0
  %1109 = vperm.xlu0 %1108, %v1039
  %v1110 = vpop.permute.xlu0 %1109
  %1113 = vset.pattern.permute.xlu0 0
  %1114 = vperm.xlu0 %1113, %v1040
  %v1115 = vpop.permute.xlu0 %1114
  %1118 = vset.pattern.permute.xlu0 0
  %1119 = vperm.xlu0 %1118, %v1041
  %v1120 = vpop.permute.xlu0 %1119
  %v1123 = vsel %vm332, %v1010, 0
  %v1126 = vsel %vm332, %v1011, 0
  %v1129 = vsel %vm332, %v1012, 0
  %v1132 = vsel %vm332, %v1013, 0
  %v1135 = vsel %vm332, %v1014, 0
  %v1138 = vsel %vm332, %v1015, 0
  %v1141 = vsel %vm332, %v1016, 0
  %v1144 = vsel %vm332, %v1017, 0
  %v1147 = vsel %vm332, %v1018, 0
  %v1150 = vsel %vm332, %v1019, 0
  %v1153 = vsel %vm332, %v1020, 0
  %v1156 = vsel %vm332, %v1021, 0
  %v1159 = vsel %vm332, %v1022, 0
  %v1162 = vsel %vm332, %v1023, 0
  %v1165 = vsel %vm332, %v1024, 0
  %v1168 = vsel %vm332, %v1025, 0
  %1170 = vmatprep.subr.mxu0 0.0
  %1171 = vmatpush1.msra.mxu0 %v1006
  %1172 = vmatprep.subr.mxu0 0.0
  %1173 = vmatpush1.msra.mxu0 %v1007
  %1174 = vmatprep.subr.mxu0 0.0
  %1175 = vmatpush1.msra.mxu0 %v1008
  %1176 = vmatprep.subr.mxu0 0.0
  %1177 = vmatpush1.msra.mxu0 %v1009
  %1178 = vmatprep.subr.mxu0 0.0
  %1179 = vmatpush1.msra.mxu0 0.0
  %1180 = vmatprep.subr.mxu0 0.0
  %1181 = vmatpush1.msra.mxu0 0.0
  %1182 = vmatprep.subr.mxu0 0.0
  %1183 = vmatpush1.msra.mxu0 0.0
  %1184 = vmatprep.subr.mxu0 0.0
  %1185 = vmatpush1.msra.mxu0 0.0
  %1186 = vmatprep.subr.mxu0 0.0
  %1187 = vmatpush1.msra.mxu0 0.0
  %1188 = vmatprep.subr.mxu0 0.0
  %1189 = vmatpush1.msra.mxu0 0.0
  %1190 = vmatprep.subr.mxu0 0.0
  %1191 = vmatpush1.msra.mxu0 0.0
  %1192 = vmatprep.subr.mxu0 0.0
  %1193 = vmatpush1.msra.mxu0 0.0
  %1194 = vmatprep.subr.mxu0 0.0
  %1195 = vmatpush1.msra.mxu0 0.0
  %1196 = vmatprep.subr.mxu0 0.0
  %1197 = vmatpush1.msra.mxu0 0.0
  %1198 = vmatprep.subr.mxu0 0.0
  %1199 = vmatpush1.msra.mxu0 0.0
  %1200 = vmatprep.subr.mxu0 0.0
  %1201 = vmatpush1.msra.mxu0 0.0
  %1202 = vmatprep.subr.mxu0 0.0
  %1203 = vmatpush1.msra.mxu0 0.0
  %1204 = vmatprep.subr.mxu0 0.0
  %1205 = vmatpush1.msra.mxu0 0.0
  %1206 = vmatprep.subr.mxu0 0.0
  %1207 = vmatpush1.msra.mxu0 0.0
  %1208 = vmatprep.subr.mxu0 0.0
  %1209 = vmatpush1.msra.mxu0 0.0
  %1210 = vmatprep.subr.mxu0 0.0
  %1211 = vmatpush1.msra.mxu0 0.0
  %1212 = vmatprep.subr.mxu0 0.0
  %1213 = vmatpush1.msra.mxu0 0.0
  %1214 = vmatprep.subr.mxu0 0.0
  %1215 = vmatpush1.msra.mxu0 0.0
  %1216 = vmatprep.subr.mxu0 0.0
  %1217 = vmatpush1.msra.mxu0 0.0
  %1218 = vmatprep.subr.mxu0 0.0
  %1219 = vmatpush1.msra.mxu0 0.0
  %1220 = vmatprep.subr.mxu0 0.0
  %1221 = vmatpush1.msra.mxu0 0.0
  %1222 = vmatprep.subr.mxu0 0.0
  %1223 = vmatpush1.msra.mxu0 0.0
  %1224 = vmatprep.subr.mxu0 0.0
  %1225 = vmatpush1.msra.mxu0 0.0
  %1226 = vmatprep.subr.mxu0 0.0
  %1227 = vmatpush1.msra.mxu0 0.0
  %1228 = vmatprep.subr.mxu0 0.0
  %1229 = vmatpush1.msra.mxu0 0.0
  %1230 = vmatprep.subr.mxu0 0.0
  %1231 = vmatpush1.msra.mxu0 0.0
  %1232 = vmatprep.subr.mxu0 0.0
  %1233 = vmatpush1.msra.mxu0 0.0
  %1234 = vmatprep.mubr.f32.mxu0 0.0
  %1235 = vmatmul.mubr.f32.gmra.mrb[0].mxu0 %v1123
  %v1236 = vpop.f32.mrb[0].mxu0
  %v1237 = vadd.f32 %v1045, %v1236
  %v1238 = vpop.f32.mrb[0].mxu0
  %1239 = vmatprep.mubr.f32.mxu0 0.0
  %1240 = vmatmul.mubr.f32.gmra.mrb[0].mxu0 %v1126
  %v1241 = vpop.f32.mrb[0].mxu0
  %v1242 = vadd.f32 %v1050, %v1241
  %v1243 = vpop.f32.mrb[0].mxu0
  %1244 = vmatprep.mubr.f32.mxu0 0.0
  %1245 = vmatmul.mubr.f32.gmra.mrb[0].mxu0 %v1129
  %v1246 = vpop.f32.mrb[0].mxu0
  %v1247 = vadd.f32 %v1055, %v1246
  %v1248 = vpop.f32.mrb[0].mxu0
  %1249 = vmatprep.mubr.f32.mxu0 0.0
  %1250 = vmatmul.mubr.f32.gmra.mrb[0].mxu0 %v1132
  %v1251 = vpop.f32.mrb[0].mxu0
  %v1252 = vadd.f32 %v1060, %v1251
  %v1253 = vpop.f32.mrb[0].mxu0
  %1254 = vmatprep.mubr.f32.mxu0 0.0
  %1255 = vmatmul.mubr.f32.gmra.mrb[0].mxu0 %v1135
  %v1256 = vpop.f32.mrb[0].mxu0
  %v1257 = vadd.f32 %v1065, %v1256
  %v1258 = vpop.f32.mrb[0].mxu0
  %1259 = vmatprep.mubr.f32.mxu0 0.0
  %1260 = vmatmul.mubr.f32.gmra.mrb[0].mxu0 %v1138
  %v1261 = vpop.f32.mrb[0].mxu0
  %v1262 = vadd.f32 %v1070, %v1261
  %v1263 = vpop.f32.mrb[0].mxu0
  %1264 = vmatprep.mubr.f32.mxu0 0.0
  %1265 = vmatmul.mubr.f32.gmra.mrb[0].mxu0 %v1141
  %v1266 = vpop.f32.mrb[0].mxu0
  %v1267 = vadd.f32 %v1075, %v1266
  %v1268 = vpop.f32.mrb[0].mxu0
  %1269 = vmatprep.mubr.f32.mxu0 0.0
  %1270 = vmatmul.mubr.f32.gmra.mrb[0].mxu0 %v1144
  %v1271 = vpop.f32.mrb[0].mxu0
  %v1272 = vadd.f32 %v1080, %v1271
  %v1273 = vpop.f32.mrb[0].mxu0
  %1274 = vmatprep.mubr.f32.mxu0 0.0
  %1275 = vmatmul.mubr.f32.gmra.mrb[0].mxu0 %v1147
  %v1276 = vpop.f32.mrb[0].mxu0
  %v1277 = vadd.f32 %v1085, %v1276
  %v1278 = vpop.f32.mrb[0].mxu0
  %1279 = vmatprep.mubr.f32.mxu0 0.0
  %1280 = vmatmul.mubr.f32.gmra.mrb[0].mxu0 %v1150
  %v1281 = vpop.f32.mrb[0].mxu0
  %v1282 = vadd.f32 %v1090, %v1281
  %v1283 = vpop.f32.mrb[0].mxu0
  %1284 = vmatprep.mubr.f32.mxu0 0.0
  %1285 = vmatmul.mubr.f32.gmra.mrb[0].mxu0 %v1153
  %v1286 = vpop.f32.mrb[0].mxu0
  %v1287 = vadd.f32 %v1095, %v1286
  %v1288 = vpop.f32.mrb[0].mxu0
  %1289 = vmatprep.mubr.f32.mxu0 0.0
  %1290 = vmatmul.mubr.f32.gmra.mrb[0].mxu0 %v1156
  %v1291 = vpop.f32.mrb[0].mxu0
  %v1292 = vadd.f32 %v1100, %v1291
  %v1293 = vpop.f32.mrb[0].mxu0
  %1294 = vmatprep.mubr.f32.mxu0 0.0
  %1295 = vmatmul.mubr.f32.gmra.mrb[0].mxu0 %v1159
  %v1296 = vpop.f32.mrb[0].mxu0
  %v1297 = vadd.f32 %v1105, %v1296
  %v1298 = vpop.f32.mrb[0].mxu0
  %1299 = vmatprep.mubr.f32.mxu0 0.0
  %1300 = vmatmul.mubr.f32.gmra.mrb[0].mxu0 %v1162
  %v1301 = vpop.f32.mrb[0].mxu0
  %v1302 = vadd.f32 %v1110, %v1301
  %v1303 = vpop.f32.mrb[0].mxu0
  %1304 = vmatprep.mubr.f32.mxu0 0.0
  %1305 = vmatmul.mubr.f32.gmra.mrb[0].mxu0 %v1165
  %v1306 = vpop.f32.mrb[0].mxu0
  %v1307 = vadd.f32 %v1115, %v1306
  %v1308 = vpop.f32.mrb[0].mxu0
  %1309 = vmatprep.mubr.f32.mxu0 0.0
  %1310 = vmatmul.mubr.f32.gmra.mrb[0].mxu0 %v1168
  %v1311 = vpop.f32.mrb[0].mxu0
  %v1312 = vadd.f32 %v1120, %v1311
  %v1313 = vpop.f32.mrb[0].mxu0
  %1314 = vdwg.mxu0
  %1315 = vxpose.xlu0.b32.start [1/16] %v1237, 128
  %1316 = vxpose.xlu0.b32.cont [2/16] %v1242, 128
  %1317 = vxpose.xlu0.b32.cont [3/16] %v1247, 128
  %1318 = vxpose.xlu0.b32.cont [4/16] %v1252, 128
  %1319 = vxpose.xlu0.b32.cont [5/16] %v1257, 128
  %1320 = vxpose.xlu0.b32.cont [6/16] %v1262, 128
  %1321 = vxpose.xlu0.b32.cont [7/16] %v1267, 128
  %1322 = vxpose.xlu0.b32.cont [8/16] %v1272, 128
  %1323 = vxpose.xlu0.b32.cont [9/16] %v1277, 128
  %1324 = vxpose.xlu0.b32.cont [10/16] %v1282, 128
  %1325 = vxpose.xlu0.b32.cont [11/16] %v1287, 128
  %1326 = vxpose.xlu0.b32.cont [12/16] %v1292, 128
  %1327 = vxpose.xlu0.b32.cont [13/16] %v1297, 128
  %1328 = vxpose.xlu0.b32.cont [14/16] %v1302, 128
  %1329 = vxpose.xlu0.b32.cont [15/16] %v1307, 128
  %1330 = vxpose.xlu0.b32.end [16/16] %v1312, 128
  %v1331 = vpop.trf.xlu0
  %v1332 = vpop.trf.xlu0
  %v1333 = vpop.trf.xlu0
  %v1334 = vpop.trf.xlu0
  %v1335 = vpop.trf.xlu0
  %v1336 = vpop.trf.xlu0
  %v1337 = vpop.trf.xlu0
  %v1338 = vpop.trf.xlu0
  %v1339 = vpop.trf.xlu0
  %v1340 = vpop.trf.xlu0
  %v1341 = vpop.trf.xlu0
  %v1342 = vpop.trf.xlu0
  %v1343 = vpop.trf.xlu0
  %v1344 = vpop.trf.xlu0
  %v1345 = vpop.trf.xlu0
  %v1346 = vpop.trf.xlu0
  %1347 = vst [vmem:[%s19] sm:$0xff] %v1331
  %1348 = vst [vmem:[%s19 + $0x8] sm:$0xff] %v1332
  %1349 = vst [vmem:[%s19 + $0x10] sm:$0xff] %v1333
  %1350 = vst [vmem:[%s19 + $0x18] sm:$0xff] %v1334
  %1351 = vst [vmem:[%s19 + $0x20] sm:$0xff] %v1335
  %1352 = vst [vmem:[%s19 + $0x28] sm:$0xff] %v1336
  %1353 = vst [vmem:[%s19 + $0x30] sm:$0xff] %v1337
  %1354 = vst [vmem:[%s19 + $0x38] sm:$0xff] %v1338
  %1355 = vst [vmem:[%s19 + $0x40] sm:$0xff] %v1339
  %1356 = vst [vmem:[%s19 + $0x48] sm:$0xff] %v1340
  %1357 = vst [vmem:[%s19 + $0x50] sm:$0xff] %v1341
  %1358 = vst [vmem:[%s19 + $0x58] sm:$0xff] %v1342
  %1359 = vst [vmem:[%s19 + $0x60] sm:$0xff] %v1343
  %1360 = vst [vmem:[%s19 + $0x68] sm:$0xff] %v1344
  %1361 = vst [vmem:[%s19 + $0x70] sm:$0xff] %v1345
  %1362 = vst [vmem:[%s19 + $0x78] sm:$0xff] %v1346
  // Predicated region
  $region78: #{ptc_map_pressure.1} parent=0 // pred_check
    _
  $region79: #{ptc_map_pressure.1} parent=0 // pred_check_branch
    %1364 = sbr.rel (0) target = $region81
  $region80: #{ptc_map_pressure.1} parent=0 // pred_region
    _
  $region81: #{ptc_map_pressure.1} parent=0 // pred_fallthru
    _
  // Predicated region
  $region82: #{ptc_map_pressure.1} parent=0 // pred_check
    _
  $region83: #{ptc_map_pressure.1} parent=0 // pred_check_branch
    %1366 = sbr.rel (0) target = $region85
  $region84: #{ptc_map_pressure.1} parent=0 // pred_region
    _
  $region85: #{ptc_map_pressure.1} parent=0 // pred_fallthru
    _

</llo_original>
